<compile_context>
chip_gen: v7x
topology: tpu7x:2x2x1
jax: 0.10.0
libtpu: 0.0.40
codegen_flags: <defaults>
</compile_context>

<pallas_src>
import jax
import jax.numpy as jnp
from jax.experimental import pallas as pl
from jax.experimental.pallas import tpu as pltpu

# ---------------------------------------------------------------------------
# Model hyper-parameters (mirrors MyGCN_v1.__init__ at small sizes)
# ---------------------------------------------------------------------------
NFEAT = 32
NHID = 16
NOUT = 8
DROPOUT = 0.5       # eval mode -> dropout is the identity
# TODO(synk): training-mode dropout (pltpu.prng_*) not implemented; kernel is eval-only.

N_NODES = 16        # nodes per graph
BATCH = 8           # graphs per pallas_call (grid axis)
NUM_LAYERS = 6
P = 128             # lane-dense padded feature width


# ---------------------------------------------------------------------------
# Pallas kernel: fused 6-layer GCN forward for one graph (one grid step)
# ---------------------------------------------------------------------------
def gcn_kernel(x_ref, adj_ref, w_ref, b_ref, out_ref):
    adj = adj_ref[...]                        # (N, N)
    h = x_ref[...]                            # (N, P) lane-dense

    # gc1..gc5: relu(adj @ (h @ W_i) + b_i)   (static Python loop -> unrolled)
    for i in range(NUM_LAYERS - 1):
        s = jnp.dot(h, w_ref[i], preferred_element_type=jnp.float32)
        h = jnp.maximum(
            jnp.dot(adj, s, preferred_element_type=jnp.float32) + b_ref[i],
            0.0)
        # dropout(h) == h in eval mode

    # gc6 (no activation)
    s = jnp.dot(h, w_ref[NUM_LAYERS - 1], preferred_element_type=jnp.float32)
    h = jnp.dot(adj, s, preferred_element_type=jnp.float32) + b_ref[NUM_LAYERS - 1]

    out_ref[...] = h.astype(out_ref.dtype)    # (N, P) lane-dense store


def gcn_forward(x_pad, adj, w_slab, b_slab):
    """x_pad: (B, N, P) f32, adj: (B, N, N) f32,
       w_slab: (6, P, P) f32, b_slab: (6, 1, P) f32  -> (B, N, NOUT)."""
    B, N, Pw = x_pad.shape
    out_padded = pl.pallas_call(
        gcn_kernel,
        out_shape=jax.ShapeDtypeStruct((B, N, Pw), jnp.float32),
        grid_spec=pltpu.PrefetchScalarGridSpec(
            num_scalar_prefetch=0,
            grid=(B,),
            in_specs=[
                pl.BlockSpec((None, N, Pw), lambda b: (b, 0, 0)),   # x (per graph)
                pl.BlockSpec((None, N, N), lambda b: (b, 0, 0)),    # adj (per graph)
                pl.BlockSpec((NUM_LAYERS, Pw, Pw), lambda b: (0, 0, 0)),  # weights, resident
                pl.BlockSpec((NUM_LAYERS, 1, Pw), lambda b: (0, 0, 0)),   # biases, resident
            ],
            out_specs=pl.BlockSpec((None, N, Pw), lambda b: (b, 0, 0)),
        ),
        compiler_params=pltpu.CompilerParams(
            dimension_semantics=("parallel",)),   # shard batch across TCs (v7x)
    )(x_pad, adj, w_slab, b_slab)
    return out_padded[:, :, :NOUT]


# ---------------------------------------------------------------------------
# Deterministic parameter init (pygcn-style uniform(-stdv, stdv))
# ---------------------------------------------------------------------------
def init_params(key):
    dims_in = [NFEAT] + [NHID] * (NUM_LAYERS - 1)      # [32,16,16,16,16,16]
    dims_out = [NHID] * (NUM_LAYERS - 1) + [NOUT]      # [16,16,16,16,16, 8]
    weights, biases = [], []
    for d_in, d_out in zip(dims_in, dims_out):
        key, kw, kb = jax.random.split(key, 3)
        stdv = 1.0 / jnp.sqrt(jnp.float32(d_out))
        w = jax.random.uniform(kw, (d_in, d_out), jnp.float32, -stdv, stdv)
        b = jax.random.uniform(kb, (d_out,), jnp.float32, -stdv, stdv)
        weights.append(w)
        biases.append(b)
    return weights, biases


def pack_params(weights, biases):
    """Zero-pad every weight to (P,P) and bias to (1,P), stack into slabs."""
    w_slab = jnp.stack([
        jnp.pad(w, ((0, P - w.shape[0]), (0, P - w.shape[1])))
        for w in weights])                                   # (6, P, P)
    b_slab = jnp.stack([
        jnp.pad(b.reshape(1, -1), ((0, 0), (0, P - b.shape[0])))
        for b in biases])                                    # (6, 1, P)
    return w_slab, b_slab


# ---------------------------------------------------------------------------
# Pure-JAX reference (for sanity check)
# ---------------------------------------------------------------------------
def reference_forward(x, adj, weights, biases):
    def single(xb, adjb):
        h = xb
        for i in range(NUM_LAYERS - 1):
            h = jnp.maximum(adjb @ (h @ weights[i]) + biases[i], 0.0)
        return adjb @ (h @ weights[NUM_LAYERS - 1]) + biases[NUM_LAYERS - 1]
    return jax.vmap(single)(x, adj)


if __name__ == "__main__":
    key = jax.random.PRNGKey(0)
    k_x, k_adj, k_par = jax.random.split(key, 3)

    # Batched node features
    x = jax.random.normal(k_x, (BATCH, N_NODES, NFEAT), jnp.float32)

    # Batched symmetric row-normalized adjacency with self loops
    a = jax.random.uniform(k_adj, (BATCH, N_NODES, N_NODES), jnp.float32)
    a = (a > 0.7).astype(jnp.float32)
    a = jnp.maximum(a, jnp.swapaxes(a, -1, -2)) + jnp.eye(N_NODES, dtype=jnp.float32)
    adj = a / jnp.sum(a, axis=-1, keepdims=True)

    weights, biases = init_params(k_par)
    w_slab, b_slab = pack_params(weights, biases)

    # Lane-dense (zero-padded) input features
    x_pad = jnp.pad(x, ((0, 0), (0, 0), (0, P - NFEAT)))

    out = gcn_forward(x_pad, adj, w_slab, b_slab)
    out = jax.block_until_ready(out)

    ref = reference_forward(x, adj, weights, biases)
    assert out.shape == (BATCH, N_NODES, NOUT)
    assert jnp.allclose(out, ref, atol=1e-4, rtol=1e-4), "mismatch vs reference"

    print("KERNEL_OK")
</pallas_src>

<mosaic_0001>
module attributes {stable_mosaic.version = 11 : i64} {
  func.func @gcn_kernel(%arg0: i32, %arg1: memref<1x16x128xf32, #tpu.memory_space<vmem>>, %arg2: memref<1x16x16xf32, #tpu.memory_space<vmem>>, %arg3: memref<6x128x128xf32, #tpu.memory_space<vmem>>, %arg4: memref<6x1x128xf32, #tpu.memory_space<vmem>>, %arg5: memref<1x16x128xf32, #tpu.memory_space<vmem>>) attributes {dimension_semantics = [#tpu.dimension_semantics<parallel>], iteration_bounds = array<i64: 8>, scalar_prefetch = 0 : i64, scratch_operands = 0 : i64, tpu.core_type = #tpu.core_type<tc>, window_params = [{transform_indices = @transform_0, window_bounds = array<i64: 1, 16, 128>}, {transform_indices = @transform_1, window_bounds = array<i64: 1, 16, 16>}, {pipeline_mode = #tpu.pipeline_mode<synchronous>, transform_indices = @transform_2, window_bounds = array<i64: 6, 128, 128>}, {pipeline_mode = #tpu.pipeline_mode<synchronous>, transform_indices = @transform_3, window_bounds = array<i64: 6, 1, 128>}, {transform_indices = @transform_4, window_bounds = array<i64: 1, 16, 128>}]} {
    %c0 = arith.constant 0 : index
    %c0_0 = arith.constant 0 : index
    %c0_1 = arith.constant 0 : index
    %0 = vector.load %arg2[%c0, %c0_0, %c0_1] : memref<1x16x16xf32, #tpu.memory_space<vmem>>, vector<1x16x16xf32>
    %1 = vector.shape_cast %0 : vector<1x16x16xf32> to vector<16x16xf32>
    %c0_2 = arith.constant 0 : index
    %c0_3 = arith.constant 0 : index
    %c0_4 = arith.constant 0 : index
    %2 = vector.load %arg1[%c0_2, %c0_3, %c0_4] : memref<1x16x128xf32, #tpu.memory_space<vmem>>, vector<1x16x128xf32>
    %3 = vector.shape_cast %2 : vector<1x16x128xf32> to vector<16x128xf32>
    %c0_5 = arith.constant 0 : index
    %c0_6 = arith.constant 0 : index
    %c0_7 = arith.constant 0 : index
    %4 = vector.load %arg3[%c0_5, %c0_6, %c0_7] : memref<6x128x128xf32, #tpu.memory_space<vmem>>, vector<1x128x128xf32>
    %5 = vector.shape_cast %4 : vector<1x128x128xf32> to vector<128x128xf32>
    %cst = arith.constant dense<0.000000e+00> : vector<16x128xf32>
    %6 = tpu.matmul %3, %5, %cst {dimension_numbers = #tpu.dot_dimension_numbers<[1], [0], [0], [1], [0, 0, 1, 1], [], []>} : vector<16x128xf32>, vector<128x128xf32>, vector<16x128xf32> -> vector<16x128xf32>
    %cst_8 = arith.constant dense<0.000000e+00> : vector<16x128xf32>
    %7 = tpu.matmul %1, %6, %cst_8 {dimension_numbers = #tpu.dot_dimension_numbers<[1], [0], [0], [1], [0, 0, 1, 1], [], []>} : vector<16x16xf32>, vector<16x128xf32>, vector<16x128xf32> -> vector<16x128xf32>
    %c0_9 = arith.constant 0 : index
    %c0_10 = arith.constant 0 : index
    %c0_11 = arith.constant 0 : index
    %8 = vector.load %arg4[%c0_9, %c0_10, %c0_11] : memref<6x1x128xf32, #tpu.memory_space<vmem>>, vector<1x1x128xf32>
    %9 = vector.shape_cast %8 : vector<1x1x128xf32> to vector<1x128xf32>
    %10 = vector.broadcast %9 : vector<1x128xf32> to vector<16x128xf32>
    %11 = arith.addf %7, %10 : vector<16x128xf32>
    %cst_12 = arith.constant 0.000000e+00 : f32
    %12 = vector.broadcast %cst_12 : f32 to vector<16x128xf32>
    %13 = arith.maximumf %11, %12 : vector<16x128xf32>
    %c1 = arith.constant 1 : index
    %c0_13 = arith.constant 0 : index
    %c0_14 = arith.constant 0 : index
    %14 = vector.load %arg3[%c1, %c0_13, %c0_14] : memref<6x128x128xf32, #tpu.memory_space<vmem>>, vector<1x128x128xf32>
    %15 = vector.shape_cast %14 : vector<1x128x128xf32> to vector<128x128xf32>
    %cst_15 = arith.constant dense<0.000000e+00> : vector<16x128xf32>
    %16 = tpu.matmul %13, %15, %cst_15 {dimension_numbers = #tpu.dot_dimension_numbers<[1], [0], [0], [1], [0, 0, 1, 1], [], []>} : vector<16x128xf32>, vector<128x128xf32>, vector<16x128xf32> -> vector<16x128xf32>
    %cst_16 = arith.constant dense<0.000000e+00> : vector<16x128xf32>
    %17 = tpu.matmul %1, %16, %cst_16 {dimension_numbers = #tpu.dot_dimension_numbers<[1], [0], [0], [1], [0, 0, 1, 1], [], []>} : vector<16x16xf32>, vector<16x128xf32>, vector<16x128xf32> -> vector<16x128xf32>
    %c1_17 = arith.constant 1 : index
    %c0_18 = arith.constant 0 : index
    %c0_19 = arith.constant 0 : index
    %18 = vector.load %arg4[%c1_17, %c0_18, %c0_19] : memref<6x1x128xf32, #tpu.memory_space<vmem>>, vector<1x1x128xf32>
    %19 = vector.shape_cast %18 : vector<1x1x128xf32> to vector<1x128xf32>
    %20 = vector.broadcast %19 : vector<1x128xf32> to vector<16x128xf32>
    %21 = arith.addf %17, %20 : vector<16x128xf32>
    %cst_20 = arith.constant 0.000000e+00 : f32
    %22 = vector.broadcast %cst_20 : f32 to vector<16x128xf32>
    %23 = arith.maximumf %21, %22 : vector<16x128xf32>
    %c2 = arith.constant 2 : index
    %c0_21 = arith.constant 0 : index
    %c0_22 = arith.constant 0 : index
    %24 = vector.load %arg3[%c2, %c0_21, %c0_22] : memref<6x128x128xf32, #tpu.memory_space<vmem>>, vector<1x128x128xf32>
    %25 = vector.shape_cast %24 : vector<1x128x128xf32> to vector<128x128xf32>
    %cst_23 = arith.constant dense<0.000000e+00> : vector<16x128xf32>
    %26 = tpu.matmul %23, %25, %cst_23 {dimension_numbers = #tpu.dot_dimension_numbers<[1], [0], [0], [1], [0, 0, 1, 1], [], []>} : vector<16x128xf32>, vector<128x128xf32>, vector<16x128xf32> -> vector<16x128xf32>
    %cst_24 = arith.constant dense<0.000000e+00> : vector<16x128xf32>
    %27 = tpu.matmul %1, %26, %cst_24 {dimension_numbers = #tpu.dot_dimension_numbers<[1], [0], [0], [1], [0, 0, 1, 1], [], []>} : vector<16x16xf32>, vector<16x128xf32>, vector<16x128xf32> -> vector<16x128xf32>
    %c2_25 = arith.constant 2 : index
    %c0_26 = arith.constant 0 : index
    %c0_27 = arith.constant 0 : index
    %28 = vector.load %arg4[%c2_25, %c0_26, %c0_27] : memref<6x1x128xf32, #tpu.memory_space<vmem>>, vector<1x1x128xf32>
    %29 = vector.shape_cast %28 : vector<1x1x128xf32> to vector<1x128xf32>
    %30 = vector.broadcast %29 : vector<1x128xf32> to vector<16x128xf32>
    %31 = arith.addf %27, %30 : vector<16x128xf32>
    %cst_28 = arith.constant 0.000000e+00 : f32
    %32 = vector.broadcast %cst_28 : f32 to vector<16x128xf32>
    %33 = arith.maximumf %31, %32 : vector<16x128xf32>
    %c3 = arith.constant 3 : index
    %c0_29 = arith.constant 0 : index
    %c0_30 = arith.constant 0 : index
    %34 = vector.load %arg3[%c3, %c0_29, %c0_30] : memref<6x128x128xf32, #tpu.memory_space<vmem>>, vector<1x128x128xf32>
    %35 = vector.shape_cast %34 : vector<1x128x128xf32> to vector<128x128xf32>
    %cst_31 = arith.constant dense<0.000000e+00> : vector<16x128xf32>
    %36 = tpu.matmul %33, %35, %cst_31 {dimension_numbers = #tpu.dot_dimension_numbers<[1], [0], [0], [1], [0, 0, 1, 1], [], []>} : vector<16x128xf32>, vector<128x128xf32>, vector<16x128xf32> -> vector<16x128xf32>
    %cst_32 = arith.constant dense<0.000000e+00> : vector<16x128xf32>
    %37 = tpu.matmul %1, %36, %cst_32 {dimension_numbers = #tpu.dot_dimension_numbers<[1], [0], [0], [1], [0, 0, 1, 1], [], []>} : vector<16x16xf32>, vector<16x128xf32>, vector<16x128xf32> -> vector<16x128xf32>
    %c3_33 = arith.constant 3 : index
    %c0_34 = arith.constant 0 : index
    %c0_35 = arith.constant 0 : index
    %38 = vector.load %arg4[%c3_33, %c0_34, %c0_35] : memref<6x1x128xf32, #tpu.memory_space<vmem>>, vector<1x1x128xf32>
    %39 = vector.shape_cast %38 : vector<1x1x128xf32> to vector<1x128xf32>
    %40 = vector.broadcast %39 : vector<1x128xf32> to vector<16x128xf32>
    %41 = arith.addf %37, %40 : vector<16x128xf32>
    %cst_36 = arith.constant 0.000000e+00 : f32
    %42 = vector.broadcast %cst_36 : f32 to vector<16x128xf32>
    %43 = arith.maximumf %41, %42 : vector<16x128xf32>
    %c4 = arith.constant 4 : index
    %c0_37 = arith.constant 0 : index
    %c0_38 = arith.constant 0 : index
    %44 = vector.load %arg3[%c4, %c0_37, %c0_38] : memref<6x128x128xf32, #tpu.memory_space<vmem>>, vector<1x128x128xf32>
    %45 = vector.shape_cast %44 : vector<1x128x128xf32> to vector<128x128xf32>
    %cst_39 = arith.constant dense<0.000000e+00> : vector<16x128xf32>
    %46 = tpu.matmul %43, %45, %cst_39 {dimension_numbers = #tpu.dot_dimension_numbers<[1], [0], [0], [1], [0, 0, 1, 1], [], []>} : vector<16x128xf32>, vector<128x128xf32>, vector<16x128xf32> -> vector<16x128xf32>
    %cst_40 = arith.constant dense<0.000000e+00> : vector<16x128xf32>
    %47 = tpu.matmul %1, %46, %cst_40 {dimension_numbers = #tpu.dot_dimension_numbers<[1], [0], [0], [1], [0, 0, 1, 1], [], []>} : vector<16x16xf32>, vector<16x128xf32>, vector<16x128xf32> -> vector<16x128xf32>
    %c4_41 = arith.constant 4 : index
    %c0_42 = arith.constant 0 : index
    %c0_43 = arith.constant 0 : index
    %48 = vector.load %arg4[%c4_41, %c0_42, %c0_43] : memref<6x1x128xf32, #tpu.memory_space<vmem>>, vector<1x1x128xf32>
    %49 = vector.shape_cast %48 : vector<1x1x128xf32> to vector<1x128xf32>
    %50 = vector.broadcast %49 : vector<1x128xf32> to vector<16x128xf32>
    %51 = arith.addf %47, %50 : vector<16x128xf32>
    %cst_44 = arith.constant 0.000000e+00 : f32
    %52 = vector.broadcast %cst_44 : f32 to vector<16x128xf32>
    %53 = arith.maximumf %51, %52 : vector<16x128xf32>
    %c5 = arith.constant 5 : index
    %c0_45 = arith.constant 0 : index
    %c0_46 = arith.constant 0 : index
    %54 = vector.load %arg3[%c5, %c0_45, %c0_46] : memref<6x128x128xf32, #tpu.memory_space<vmem>>, vector<1x128x128xf32>
    %55 = vector.shape_cast %54 : vector<1x128x128xf32> to vector<128x128xf32>
    %cst_47 = arith.constant dense<0.000000e+00> : vector<16x128xf32>
    %56 = tpu.matmul %53, %55, %cst_47 {dimension_numbers = #tpu.dot_dimension_numbers<[1], [0], [0], [1], [0, 0, 1, 1], [], []>} : vector<16x128xf32>, vector<128x128xf32>, vector<16x128xf32> -> vector<16x128xf32>
    %cst_48 = arith.constant dense<0.000000e+00> : vector<16x128xf32>
    %57 = tpu.matmul %1, %56, %cst_48 {dimension_numbers = #tpu.dot_dimension_numbers<[1], [0], [0], [1], [0, 0, 1, 1], [], []>} : vector<16x16xf32>, vector<16x128xf32>, vector<16x128xf32> -> vector<16x128xf32>
    %c5_49 = arith.constant 5 : index
    %c0_50 = arith.constant 0 : index
    %c0_51 = arith.constant 0 : index
    %58 = vector.load %arg4[%c5_49, %c0_50, %c0_51] : memref<6x1x128xf32, #tpu.memory_space<vmem>>, vector<1x1x128xf32>
    %59 = vector.shape_cast %58 : vector<1x1x128xf32> to vector<1x128xf32>
    %60 = vector.broadcast %59 : vector<1x128xf32> to vector<16x128xf32>
    %61 = arith.addf %57, %60 : vector<16x128xf32>
    %c0_52 = arith.constant 0 : index
    %c0_53 = arith.constant 0 : index
    %c0_54 = arith.constant 0 : index
    %62 = vector.load %arg5[%c0_52, %c0_53, %c0_54] : memref<1x16x128xf32, #tpu.memory_space<vmem>>, vector<1x16x128xf32>
    %63 = vector.shape_cast %62 : vector<1x16x128xf32> to vector<16x128xf32>
    %64 = vector.shape_cast %61 : vector<16x128xf32> to vector<1x16x128xf32>
    tpu.vector_store %arg5[%c0_52, %c0_53, %c0_54], %64 {strides = array<i32>} : memref<1x16x128xf32, #tpu.memory_space<vmem>>, vector<1x16x128xf32>,
    return
  }
  func.func @transform_0(%arg0: i32) -> (i32, i32, i32) {
    %c0_i32 = arith.constant 0 : i32
    %c0_i32_0 = arith.constant 0 : i32
    %c0_i32_1 = arith.constant 0 : i32
    return %arg0, %c0_i32, %c0_i32_0 : i32, i32, i32
  }
  func.func @transform_1(%arg0: i32) -> (i32, i32, i32) {
    %c0_i32 = arith.constant 0 : i32
    %c0_i32_0 = arith.constant 0 : i32
    %c0_i32_1 = arith.constant 0 : i32
    return %arg0, %c0_i32, %c0_i32_0 : i32, i32, i32
  }
  func.func @transform_2(%arg0: i32) -> (i32, i32, i32) {
    %c0_i32 = arith.constant 0 : i32
    %c0_i32_0 = arith.constant 0 : i32
    %c0_i32_1 = arith.constant 0 : i32
    %c0_i32_2 = arith.constant 0 : i32
    return %c0_i32, %c0_i32_0, %c0_i32_1 : i32, i32, i32
  }
  func.func @transform_3(%arg0: i32) -> (i32, i32, i32) {
    %c0_i32 = arith.constant 0 : i32
    %c0_i32_0 = arith.constant 0 : i32
    %c0_i32_1 = arith.constant 0 : i32
    %c0_i32_2 = arith.constant 0 : i32
    return %c0_i32, %c0_i32_0, %c0_i32_1 : i32, i32, i32
  }
  func.func @transform_4(%arg0: i32) -> (i32, i32, i32) {
    %c0_i32 = arith.constant 0 : i32
    %c0_i32_0 = arith.constant 0 : i32
    %c0_i32_1 = arith.constant 0 : i32
    return %arg0, %c0_i32, %c0_i32_0 : i32, i32, i32
  }
}

</mosaic_0001>

<llo_original>
// kernel: tpu_custom_call.1
$region0: #{tpu_custom_call.1}
  #allocation0 [shape = 'u32[]', space=smem, size = 0x4, offset = 0x4, fixed_abs, tag = 'smem constant byte address 0x4 - core index']
  #allocation1 [shape = 'u32[144,128]{1,0:T(1,128)}', space=vmem, size = 0x12000, scoped, tag = 'internal scratch']
  %s0 = inlined_call_operand.hbm [shape: f32[8,16,128], index: 0, kind: input, shape index: {}]
  %s1 = inlined_call_operand.hbm [shape: f32[8,16,16], index: 1, kind: input, shape index: {}]
  %s2 = inlined_call_operand.hbm [shape: f32[6,128,128], index: 2, kind: input, shape index: {}]
  %s3 = inlined_call_operand.vmem [shape: f32[6,1,128], index: 3, kind: input, shape index: {}]
  %s4 = inlined_call_operand.hbm [shape: f32[8,16,128], index: 4, kind: output, shape index: {}]
  %s5 = sld [smem:[#allocation0]]
  $region61: #{tpu_custom_call.1} parent=0
    _
  %s7 = ssub.s32 1, %s5
  %s8 = scalar_select 0, %s7, %s5
  $region1: #{tpu_custom_call.1} parent=0
    #allocation2 [shape = 'u8[16384]{0}', space=vmem, size = 0x4000, scoped, tag = 'input window, operand 0']
    #allocation3 [shape = 's32[2]{0}', space=sflag, size = 0x8, scoped, tag = 'scoped memory for tpu_custom_call.1']
    #allocation4 [shape = 's32[2]{0}', space=sflag, size = 0x8, scoped, tag = 'scoped memory for tpu_custom_call.1']
    #allocation5 [shape = 'u8[16384]{0}', space=vmem, size = 0x4000, scoped, tag = 'input window, operand 1']
    #allocation6 [shape = 's32[2]{0}', space=sflag, size = 0x8, scoped, tag = 'scoped memory for tpu_custom_call.1']
    #allocation7 [shape = 'u8[393216]{0}', space=vmem, size = 0x60000, scoped, tag = 'input window, operand 2, single buffered']
    #allocation8 [shape = 'u8[16384]{0}', space=vmem, size = 0x4000, scoped, tag = 'output window, operand 0']
    %9 = vsyncpa [#allocation3], 0
    %s10 = scalar_lea.sflag [#allocation3], 1
    %11 = vsyncpa %s10, 0
    %12 = vsyncpa [#allocation6], 0
    %s13 = scalar_lea.sflag [#allocation6], 1
    %14 = vsyncpa %s13, 0
    %15 = vsyncpa [#allocation4], 0
    %s16 = scalar_lea.sflag [#allocation4], 1
    %17 = vsyncpa %s16, 0
    loop: start=0, step=1, limit=10
    $region2: #{tpu_custom_call.1} parent=1 // loop_pre_header
      _
    $region3: #{tpu_custom_call.1} parent=1 // loop_header
      %s19 = sphi 0, %s23
      %p20 = scmp.ge.s32.totalorder %s19, 10
      %s29 = sphi 0, %s31
      %s32 = sphi 0, %s29
      %s33 = sphi 0, %s32
      %s49 = sphi 0, %s33
      %s55 = sphi 0, %s57
      %s58 = sphi 0, %s55
      %s59 = sphi 0, %s58
      %s75 = sphi 0, %s59
      %s79 = sphi 0, %s79
      %s81 = sphi 0, %s79
      %s82 = sphi 0, %s81
      %s96 = sphi 0, %s82
      %s100 = sphi 0, %s100
      %s102 = sphi 0, %s100
      %s103 = sphi 0, %s102
      %s117 = sphi 0, %s103
      %s123 = sphi 0, %s125
      %s126 = sphi 0, %s123
      %s127 = sphi 0, %s126
      %s143 = sphi 0, %s127
    $region4: #{tpu_custom_call.1} parent=1 // loop_header_branch
      %22 = sbr.rel (%p20) target = $region8
    $region5: #{tpu_custom_call.1} parent=1 // loop_body
      %s24 = ssub.s32 %s19, 1
      %s25 = ssub.s32 %s19, 2
      %s26 = sadd.s32 %s19, 1
      %s27 = ssub.s32 %s19, %s26
      %p28 = scmp.eq.s32.totalorder %s27, 0
      %s30 = sadd.s32 %s29, 1
      %s31 = scalar_select %p28, %s29, %s30
      %p34 = pneg %p28
      %p35 = scmp.eq.s32.totalorder %s19, 7
      %p36 = por %p34, %p35
      %p37 = scmp.ne.s32.totalorder %s29, %s32
      %p38 = scmp.eq.s32.totalorder %s19, 0
      %p39 = por %p37, %p38
      %p40 = scmp.ne.s32.totalorder %s29, %s32
      %p41 = scmp.eq.s32.totalorder %s24, 7
      %p42 = por %p40, %p41
      %p43 = scmp.ne.s32.totalorder %s32, %s33
      %p44 = scmp.eq.s32.totalorder %s24, 0
      %p45 = por %p43, %p44
      %p46 = scmp.ne.s32.totalorder %s32, %s33
      %p47 = scmp.eq.s32.totalorder %s25, 7
      %p48 = por %p46, %p47
      %p50 = scmp.ne.s32.totalorder %s33, %s49
      %p51 = scmp.eq.s32.totalorder %s25, 0
      %p52 = por %p50, %p51
      %s53 = ssub.s32 %s19, %s26
      %p54 = scmp.eq.s32.totalorder %s53, 0
      %s56 = sadd.s32 %s55, 1
      %s57 = scalar_select %p54, %s55, %s56
      %p60 = pneg %p54
      %p61 = scmp.eq.s32.totalorder %s19, 7
      %p62 = por %p60, %p61
      %p63 = scmp.ne.s32.totalorder %s55, %s58
      %p64 = scmp.eq.s32.totalorder %s19, 0
      %p65 = por %p63, %p64
      %p66 = scmp.ne.s32.totalorder %s55, %s58
      %p67 = scmp.eq.s32.totalorder %s24, 7
      %p68 = por %p66, %p67
      %p69 = scmp.ne.s32.totalorder %s58, %s59
      %p70 = scmp.eq.s32.totalorder %s24, 0
      %p71 = por %p69, %p70
      %p72 = scmp.ne.s32.totalorder %s58, %s59
      %p73 = scmp.eq.s32.totalorder %s25, 7
      %p74 = por %p72, %p73
      %p76 = scmp.ne.s32.totalorder %s59, %s75
      %p77 = scmp.eq.s32.totalorder %s25, 0
      %p78 = por %p76, %p77
      %s80 = sadd.s32 %s79, 1
      %p83 = scmp.eq.s32.totalorder %s19, 7
      %p84 = scmp.ne.s32.totalorder %s79, %s81
      %p85 = scmp.eq.s32.totalorder %s19, 0
      %p86 = por %p84, %p85
      %p87 = scmp.ne.s32.totalorder %s79, %s81
      %p88 = scmp.eq.s32.totalorder %s24, 7
      %p89 = por %p87, %p88
      %p90 = scmp.ne.s32.totalorder %s81, %s82
      %p91 = scmp.eq.s32.totalorder %s24, 0
      %p92 = por %p90, %p91
      %p93 = scmp.ne.s32.totalorder %s81, %s82
      %p94 = scmp.eq.s32.totalorder %s25, 7
      %p95 = por %p93, %p94
      %p97 = scmp.ne.s32.totalorder %s82, %s96
      %p98 = scmp.eq.s32.totalorder %s25, 0
      %p99 = por %p97, %p98
      %s101 = sadd.s32 %s100, 1
      %p104 = scmp.eq.s32.totalorder %s19, 7
      %p105 = scmp.ne.s32.totalorder %s100, %s102
      %p106 = scmp.eq.s32.totalorder %s19, 0
      %p107 = por %p105, %p106
      %p108 = scmp.ne.s32.totalorder %s100, %s102
      %p109 = scmp.eq.s32.totalorder %s24, 7
      %p110 = por %p108, %p109
      %p111 = scmp.ne.s32.totalorder %s102, %s103
      %p112 = scmp.eq.s32.totalorder %s24, 0
      %p113 = por %p111, %p112
      %p114 = scmp.ne.s32.totalorder %s102, %s103
      %p115 = scmp.eq.s32.totalorder %s25, 7
      %p116 = por %p114, %p115
      %p118 = scmp.ne.s32.totalorder %s103, %s117
      %p119 = scmp.eq.s32.totalorder %s25, 0
      %p120 = por %p118, %p119
      %s121 = ssub.s32 %s19, %s26
      %p122 = scmp.eq.s32.totalorder %s121, 0
      %s124 = sadd.s32 %s123, 1
      %s125 = scalar_select %p122, %s123, %s124
      %p128 = pneg %p122
      %p129 = scmp.eq.s32.totalorder %s19, 7
      %p130 = por %p128, %p129
      %p131 = scmp.ne.s32.totalorder %s123, %s126
      %p132 = scmp.eq.s32.totalorder %s19, 0
      %p133 = por %p131, %p132
      %p134 = scmp.ne.s32.totalorder %s123, %s126
      %p135 = scmp.eq.s32.totalorder %s24, 7
      %p136 = por %p134, %p135
      %p137 = scmp.ne.s32.totalorder %s126, %s127
      %p138 = scmp.eq.s32.totalorder %s24, 0
      %p139 = por %p137, %p138
      %p140 = scmp.ne.s32.totalorder %s126, %s127
      %p141 = scmp.eq.s32.totalorder %s25, 7
      %p142 = por %p140, %p141
      %p144 = scmp.ne.s32.totalorder %s127, %s143
      %p145 = scmp.eq.s32.totalorder %s25, 0
      %p146 = por %p144, %p145
      %p147 = scmp.le.s32.totalorder 1, %s19
      %p148 = scmp.lt.s32.totalorder %s19, 9
      %p149 = pnand %p147, %p148
      %p150 = pneg %p149
      // Predicated region
      $region9: #{tpu_custom_call.1} parent=5 // pred_check
        _
      $region10: #{tpu_custom_call.1} parent=5 // pred_check_branch
        %152 = sbr.rel (%p149) target = $region12
      $region11: #{tpu_custom_call.1} parent=5 // pred_region
        %s153 = ssub.s32 %s19, 1
        // Predicated region
        $region13: #{tpu_custom_call.1} parent=11 // pred_check
          %p154 = pneg %p92
        $region14: #{tpu_custom_call.1} parent=11 // pred_check_branch
          %156 = sbr.rel (%p154) target = $region16
        $region15: #{tpu_custom_call.1} parent=11 // pred_region
          %s158 = ssub.s32 12288, 12288
          %159 = vsyncadd [#allocation6], %s158
          %s160 = sshll.u32 [#allocation7], 4
          %s161 = int_to_ptr.vmem [resolvable:$true] %s160
          %166 = dma.hbm_to_vmem [thread:$0]  %s2, 12288, %s161, [#allocation6], 128, 128, 8
        $region16: #{tpu_custom_call.1} parent=11 // pred_fallthru
          _
        // Predicated region
        $region17: #{tpu_custom_call.1} parent=11 // pred_check
          %p167 = pneg %p113
        $region18: #{tpu_custom_call.1} parent=11 // pred_check_branch
          %169 = sbr.rel (%p167) target = $region20
        $region19: #{tpu_custom_call.1} parent=11 // pred_region
          _
        $region20: #{tpu_custom_call.1} parent=11 // pred_fallthru
          _
      $region12: #{tpu_custom_call.1} parent=5 // pred_fallthru
        _
      %p170 = scmp.lt.s32.totalorder %s19, 8
      // Predicated region
      $region21: #{tpu_custom_call.1} parent=5 // pred_check
        %p171 = pneg %p170
      $region22: #{tpu_custom_call.1} parent=5 // pred_check_branch
        %173 = sbr.rel (%p171) target = $region24
      $region23: #{tpu_custom_call.1} parent=5 // pred_region
        // Predicated region
        $region25: #{tpu_custom_call.1} parent=23 // pred_check
          %p174 = pneg %p39
        $region26: #{tpu_custom_call.1} parent=23 // pred_check_branch
          %176 = sbr.rel (%p174) target = $region28
        $region27: #{tpu_custom_call.1} parent=23 // pred_region
          %s177 = sand.u32 %s29, 1
          %s178 = scalar_lea.sflag [#allocation3], %s177
          %s179 = sand.u32 %s29, 1
          %s180 = smul.addr %s179, 16
          %s181 = scalar_lea.vmem [#allocation2], %s180
          %s183 = ssub.s32 256, 256
          %184 = vsyncadd %s178, %s183
          %s185 = smul.addr %s19, 2
          %s186 = smul.addr %s185, 128
          %s187 = scalar_lea.hbm %s0, %s186
          %s188 = sshll.u32 %s181, 4
          %s189 = int_to_ptr.vmem [resolvable:$true] %s188
          %194 = dma.hbm_to_vmem [thread:$0]  %s187, 256, %s189, %s178, 128, 128, 8
        $region28: #{tpu_custom_call.1} parent=23 // pred_fallthru
          _
        // Predicated region
        $region29: #{tpu_custom_call.1} parent=23 // pred_check
          %p195 = pneg %p65
        $region30: #{tpu_custom_call.1} parent=23 // pred_check_branch
          %197 = sbr.rel (%p195) target = $region32
        $region31: #{tpu_custom_call.1} parent=23 // pred_region
          %s198 = sand.u32 %s19, 1
          %s199 = scalar_lea.sflag [#allocation6], %s198
          %s200 = sand.u32 %s55, 1
          %s201 = smul.addr %s200, 16
          %s202 = scalar_lea.vmem [#allocation5], %s201
          %s204 = ssub.s32 256, 256
          %205 = vsyncadd %s199, %s204
          %s206 = smul.addr %s19, 2
          %s207 = smul.addr %s206, 128
          %s208 = scalar_lea.hbm %s1, %s207
          %s209 = sshll.u32 %s202, 4
          %s210 = int_to_ptr.vmem [resolvable:$true] %s209
          %215 = dma.hbm_to_vmem [thread:$0]  %s208, 256, %s210, %s199, 128, 128, 8
        $region32: #{tpu_custom_call.1} parent=23 // pred_fallthru
          _
      $region24: #{tpu_custom_call.1} parent=5 // pred_fallthru
        _
      %p216 = scmp.le.s32.totalorder 1, %s19
      %p217 = scmp.lt.s32.totalorder %s19, 9
      %p218 = pnand %p216, %p217
      %p219 = pneg %p218
      // Predicated region
      $region33: #{tpu_custom_call.1} parent=5 // pred_check
        _
      $region34: #{tpu_custom_call.1} parent=5 // pred_check_branch
        %221 = sbr.rel (%p218) target = $region36
      $region35: #{tpu_custom_call.1} parent=5 // pred_region
        %s222 = ssub.s32 %s19, 1
        %s223 = sand.u32 %s32, 1
        %s224 = scalar_lea.sflag [#allocation3], %s223
        %s225 = sand.u32 %s32, 1
        %s226 = smul.addr %s225, 16
        %s227 = scalar_lea.vmem [#allocation2], %s226
        // Predicated region
        $region37: #{tpu_custom_call.1} parent=35 // pred_check
          %p228 = pneg %p45
        $region38: #{tpu_custom_call.1} parent=35 // pred_check_branch
          %230 = sbr.rel (%p228) target = $region40
        $region39: #{tpu_custom_call.1} parent=35 // pred_region
          %231 = dma.done %s224, 256
        $region40: #{tpu_custom_call.1} parent=35 // pred_fallthru
          _
        %s232 = sand.u32 %s24, 1
        %s233 = scalar_lea.sflag [#allocation6], %s232
        %s234 = sand.u32 %s58, 1
        %s235 = smul.addr %s234, 16
        %s236 = scalar_lea.vmem [#allocation5], %s235
        // Predicated region
        $region41: #{tpu_custom_call.1} parent=35 // pred_check
          %p237 = pneg %p71
        $region42: #{tpu_custom_call.1} parent=35 // pred_check_branch
          %239 = sbr.rel (%p237) target = $region44
        $region43: #{tpu_custom_call.1} parent=35 // pred_region
          %240 = dma.done %s233, 256
        $region44: #{tpu_custom_call.1} parent=35 // pred_fallthru
          _
        // Predicated region
        $region45: #{tpu_custom_call.1} parent=35 // pred_check
          %p241 = pneg %p92
        $region46: #{tpu_custom_call.1} parent=35 // pred_check_branch
          %243 = sbr.rel (%p241) target = $region48
        $region47: #{tpu_custom_call.1} parent=35 // pred_region
          %244 = dma.done [#allocation6], 12288
        $region48: #{tpu_custom_call.1} parent=35 // pred_fallthru
          _
        %s245 = sand.u32 %s32, 1
        %s246 = scalar_lea.sflag [#allocation3], %s245
        %s247 = sand.u32 %s32, 1
        %s248 = smul.addr %s247, 16
        %s249 = scalar_lea.vmem [#allocation2], %s248
        %p250 = pneg %p45
        %p251 = pneg %p42
        %s252 = sand.u32 %s24, 1
        %s253 = scalar_lea.sflag [#allocation6], %s252
        %s254 = sand.u32 %s58, 1
        %s255 = smul.addr %s254, 16
        %s256 = scalar_lea.vmem [#allocation5], %s255
        %p257 = pneg %p71
        %p258 = pneg %p68
        %p259 = pneg %p92
        %p260 = pneg %p89
        %p261 = pneg %p113
        %p262 = pneg %p110
        %p263 = pneg %p139
        %p264 = pneg %p136
        %s265 = sand.u32 %s126, 1
        %s266 = scalar_lea.sflag [#allocation4], %s265
        %s267 = sand.u32 %s126, 1
        %s268 = smul.addr %s267, 16
        %s269 = scalar_lea.vmem [#allocation8], %s268
        %v270 = vld [vmem:[%s236] sm:$0xff]
        %v271 = vld [vmem:[%s236 + $0x8] sm:$0xff]
        %v272 = vld [vmem:[%s227] sm:$0xff]
        %v273 = vld [vmem:[%s227 + $0x8] sm:$0xff]
        %v274 = vld [vmem:[#allocation7] sm:$0xff]
        %v275 = vld [vmem:[#allocation7 + $0x8] sm:$0xff]
        %v276 = vld [vmem:[#allocation7 + $0x10] sm:$0xff]
        %v277 = vld [vmem:[#allocation7 + $0x18] sm:$0xff]
        %v278 = vld [vmem:[#allocation7 + $0x20] sm:$0xff]
        %v279 = vld [vmem:[#allocation7 + $0x28] sm:$0xff]
        %v280 = vld [vmem:[#allocation7 + $0x30] sm:$0xff]
        %v281 = vld [vmem:[#allocation7 + $0x38] sm:$0xff]
        %v282 = vld [vmem:[#allocation7 + $0x40] sm:$0xff]
        %v283 = vld [vmem:[#allocation7 + $0x48] sm:$0xff]
        %v284 = vld [vmem:[#allocation7 + $0x50] sm:$0xff]
        %v285 = vld [vmem:[#allocation7 + $0x58] sm:$0xff]
        %v286 = vld [vmem:[#allocation7 + $0x60] sm:$0xff]
        %v287 = vld [vmem:[#allocation7 + $0x68] sm:$0xff]
        %v288 = vld [vmem:[#allocation7 + $0x70] sm:$0xff]
        %v289 = vld [vmem:[#allocation7 + $0x78] sm:$0xff]
        %290 = vmatprep.subr.mxu0 0.0
        %291 = vmatpush1.msra.mxu0 %v274
        %292 = vmatprep.subr.mxu0 0.0
        %293 = vmatpush1.msra.mxu0 %v275
        %294 = vmatprep.subr.mxu0 0.0
        %295 = vmatpush1.msra.mxu0 %v276
        %296 = vmatprep.subr.mxu0 0.0
        %297 = vmatpush1.msra.mxu0 %v277
        %298 = vmatprep.subr.mxu0 0.0
        %299 = vmatpush1.msra.mxu0 %v278
        %300 = vmatprep.subr.mxu0 0.0
        %301 = vmatpush1.msra.mxu0 %v279
        %302 = vmatprep.subr.mxu0 0.0
        %303 = vmatpush1.msra.mxu0 %v280
        %304 = vmatprep.subr.mxu0 0.0
        %305 = vmatpush1.msra.mxu0 %v281
        %306 = vmatprep.subr.mxu0 0.0
        %307 = vmatpush1.msra.mxu0 %v282
        %308 = vmatprep.subr.mxu0 0.0
        %309 = vmatpush1.msra.mxu0 %v283
        %310 = vmatprep.subr.mxu0 0.0
        %311 = vmatpush1.msra.mxu0 %v284
        %312 = vmatprep.subr.mxu0 0.0
        %313 = vmatpush1.msra.mxu0 %v285
        %314 = vmatprep.subr.mxu0 0.0
        %315 = vmatpush1.msra.mxu0 %v286
        %316 = vmatprep.subr.mxu0 0.0
        %317 = vmatpush1.msra.mxu0 %v287
        %318 = vmatprep.subr.mxu0 0.0
        %319 = vmatpush1.msra.mxu0 %v288
        %320 = vmatprep.subr.mxu0 0.0
        %321 = vmatpush1.msra.mxu0 %v289
        %322 = vmatprep.subr.mxu0 0.0
        %323 = vmatpush1.msra.mxu0 0.0
        %324 = vmatprep.subr.mxu0 0.0
        %325 = vmatpush1.msra.mxu0 0.0
        %326 = vmatprep.subr.mxu0 0.0
        %327 = vmatpush1.msra.mxu0 0.0
        %328 = vmatprep.subr.mxu0 0.0
        %329 = vmatpush1.msra.mxu0 0.0
        %330 = vmatprep.subr.mxu0 0.0
        %331 = vmatpush1.msra.mxu0 0.0
        %332 = vmatprep.subr.mxu0 0.0
        %333 = vmatpush1.msra.mxu0 0.0
        %334 = vmatprep.subr.mxu0 0.0
        %335 = vmatpush1.msra.mxu0 0.0
        %336 = vmatprep.subr.mxu0 0.0
        %337 = vmatpush1.msra.mxu0 0.0
        %338 = vmatprep.subr.mxu0 0.0
        %339 = vmatpush1.msra.mxu0 0.0
        %340 = vmatprep.subr.mxu0 0.0
        %341 = vmatpush1.msra.mxu0 0.0
        %342 = vmatprep.subr.mxu0 0.0
        %343 = vmatpush1.msra.mxu0 0.0
        %344 = vmatprep.subr.mxu0 0.0
        %345 = vmatpush1.msra.mxu0 0.0
        %346 = vmatprep.subr.mxu0 0.0
        %347 = vmatpush1.msra.mxu0 0.0
        %348 = vmatprep.subr.mxu0 0.0
        %349 = vmatpush1.msra.mxu0 0.0
        %350 = vmatprep.subr.mxu0 0.0
        %351 = vmatpush1.msra.mxu0 0.0
        %352 = vmatprep.subr.mxu0 0.0
        %353 = vmatpush1.msra.mxu0 0.0
        %354 = vmatprep.mubr.f32.mxu0 0.0
        %355 = vmatmul.mubr.f32.gmra.mrb[0].mxu0 %v272
        %v356 = vpop.f32.mrb[0].mxu0
        %v357 = vadd.f32 0.0, %v356
        %v358 = vpop.f32.mrb[0].mxu0
        %359 = vmatprep.mubr.f32.mxu0 0.0
        %360 = vmatmul.mubr.f32.gmra.mrb[0].mxu0 %v273
        %v361 = vpop.f32.mrb[0].mxu0
        %v362 = vadd.f32 0.0, %v361
        %v363 = vpop.f32.mrb[0].mxu0
        %364 = vdwg.mxu0
        %v365 = vld [vmem:[%s3] sm:$0x1]
        %v367 = vlaneseq
        %v368 = vshrl.u32 %v367, 7
        %v369 = vsub.s32 0, %v368
        %v370 = vrot.slane %v365, %v369
        %vm372 = vcmask 130048
        %v374 = vsel %vm372, %v270, 0
        %v377 = vsel %vm372, %v271, 0
        %379 = vmatprep.subr.mxu0 0.0
        %380 = vmatpush1.msra.mxu0 %v357
        %381 = vmatprep.subr.mxu0 0.0
        %382 = vmatpush1.msra.mxu0 %v362
        %383 = vmatprep.subr.mxu0 0.0
        %384 = vmatpush1.msra.mxu0 0.0
        %385 = vmatprep.subr.mxu0 0.0
        %386 = vmatpush1.msra.mxu0 0.0
        %387 = vmatprep.subr.mxu0 0.0
        %388 = vmatpush1.msra.mxu0 0.0
        %389 = vmatprep.subr.mxu0 0.0
        %390 = vmatpush1.msra.mxu0 0.0
        %391 = vmatprep.subr.mxu0 0.0
        %392 = vmatpush1.msra.mxu0 0.0
        %393 = vmatprep.subr.mxu0 0.0
        %394 = vmatpush1.msra.mxu0 0.0
        %395 = vmatprep.subr.mxu0 0.0
        %396 = vmatpush1.msra.mxu0 0.0
        %397 = vmatprep.subr.mxu0 0.0
        %398 = vmatpush1.msra.mxu0 0.0
        %399 = vmatprep.subr.mxu0 0.0
        %400 = vmatpush1.msra.mxu0 0.0
        %401 = vmatprep.subr.mxu0 0.0
        %402 = vmatpush1.msra.mxu0 0.0
        %403 = vmatprep.subr.mxu0 0.0
        %404 = vmatpush1.msra.mxu0 0.0
        %405 = vmatprep.subr.mxu0 0.0
        %406 = vmatpush1.msra.mxu0 0.0
        %407 = vmatprep.subr.mxu0 0.0
        %408 = vmatpush1.msra.mxu0 0.0
        %409 = vmatprep.subr.mxu0 0.0
        %410 = vmatpush1.msra.mxu0 0.0
        %411 = vmatprep.subr.mxu0 0.0
        %412 = vmatpush1.msra.mxu0 0.0
        %413 = vmatprep.subr.mxu0 0.0
        %414 = vmatpush1.msra.mxu0 0.0
        %415 = vmatprep.subr.mxu0 0.0
        %416 = vmatpush1.msra.mxu0 0.0
        %417 = vmatprep.subr.mxu0 0.0
        %418 = vmatpush1.msra.mxu0 0.0
        %419 = vmatprep.subr.mxu0 0.0
        %420 = vmatpush1.msra.mxu0 0.0
        %421 = vmatprep.subr.mxu0 0.0
        %422 = vmatpush1.msra.mxu0 0.0
        %423 = vmatprep.subr.mxu0 0.0
        %424 = vmatpush1.msra.mxu0 0.0
        %425 = vmatprep.subr.mxu0 0.0
        %426 = vmatpush1.msra.mxu0 0.0
        %427 = vmatprep.subr.mxu0 0.0
        %428 = vmatpush1.msra.mxu0 0.0
        %429 = vmatprep.subr.mxu0 0.0
        %430 = vmatpush1.msra.mxu0 0.0
        %431 = vmatprep.subr.mxu0 0.0
        %432 = vmatpush1.msra.mxu0 0.0
        %433 = vmatprep.subr.mxu0 0.0
        %434 = vmatpush1.msra.mxu0 0.0
        %435 = vmatprep.subr.mxu0 0.0
        %436 = vmatpush1.msra.mxu0 0.0
        %437 = vmatprep.subr.mxu0 0.0
        %438 = vmatpush1.msra.mxu0 0.0
        %439 = vmatprep.subr.mxu0 0.0
        %440 = vmatpush1.msra.mxu0 0.0
        %441 = vmatprep.subr.mxu0 0.0
        %442 = vmatpush1.msra.mxu0 0.0
        %443 = vmatprep.mubr.f32.mxu0 0.0
        %444 = vmatmul.mubr.f32.gmra.mrb[0].mxu0 %v374
        %v445 = vpop.f32.mrb[0].mxu0
        %v446 = vadd.f32 %v370, %v445
        %v447 = vpop.f32.mrb[0].mxu0
        %448 = vmatprep.mubr.f32.mxu0 0.0
        %449 = vmatmul.mubr.f32.gmra.mrb[0].mxu0 %v377
        %v450 = vpop.f32.mrb[0].mxu0
        %v451 = vadd.f32 %v370, %v450
        %v452 = vpop.f32.mrb[0].mxu0
        %453 = vdwg.mxu0
        %v454 = vmax.f32 %v446, 0.0
        %v455 = vmax.f32 %v451, 0.0
        %s456 = scalar_lea.vmem [#allocation7], 128
        %v457 = vld [vmem:[%s456] sm:$0xff]
        %v458 = vld [vmem:[%s456 + $0x8] sm:$0xff]
        %v459 = vld [vmem:[%s456 + $0x10] sm:$0xff]
        %v460 = vld [vmem:[%s456 + $0x18] sm:$0xff]
        %v461 = vld [vmem:[%s456 + $0x20] sm:$0xff]
        %v462 = vld [vmem:[%s456 + $0x28] sm:$0xff]
        %v463 = vld [vmem:[%s456 + $0x30] sm:$0xff]
        %v464 = vld [vmem:[%s456 + $0x38] sm:$0xff]
        %v465 = vld [vmem:[%s456 + $0x40] sm:$0xff]
        %v466 = vld [vmem:[%s456 + $0x48] sm:$0xff]
        %v467 = vld [vmem:[%s456 + $0x50] sm:$0xff]
        %v468 = vld [vmem:[%s456 + $0x58] sm:$0xff]
        %v469 = vld [vmem:[%s456 + $0x60] sm:$0xff]
        %v470 = vld [vmem:[%s456 + $0x68] sm:$0xff]
        %v471 = vld [vmem:[%s456 + $0x70] sm:$0xff]
        %v472 = vld [vmem:[%s456 + $0x78] sm:$0xff]
        %473 = vmatprep.subr.mxu0 0.0
        %474 = vmatpush1.msra.mxu0 %v457
        %475 = vmatprep.subr.mxu0 0.0
        %476 = vmatpush1.msra.mxu0 %v458
        %477 = vmatprep.subr.mxu0 0.0
        %478 = vmatpush1.msra.mxu0 %v459
        %479 = vmatprep.subr.mxu0 0.0
        %480 = vmatpush1.msra.mxu0 %v460
        %481 = vmatprep.subr.mxu0 0.0
        %482 = vmatpush1.msra.mxu0 %v461
        %483 = vmatprep.subr.mxu0 0.0
        %484 = vmatpush1.msra.mxu0 %v462
        %485 = vmatprep.subr.mxu0 0.0
        %486 = vmatpush1.msra.mxu0 %v463
        %487 = vmatprep.subr.mxu0 0.0
        %488 = vmatpush1.msra.mxu0 %v464
        %489 = vmatprep.subr.mxu0 0.0
        %490 = vmatpush1.msra.mxu0 %v465
        %491 = vmatprep.subr.mxu0 0.0
        %492 = vmatpush1.msra.mxu0 %v466
        %493 = vmatprep.subr.mxu0 0.0
        %494 = vmatpush1.msra.mxu0 %v467
        %495 = vmatprep.subr.mxu0 0.0
        %496 = vmatpush1.msra.mxu0 %v468
        %497 = vmatprep.subr.mxu0 0.0
        %498 = vmatpush1.msra.mxu0 %v469
        %499 = vmatprep.subr.mxu0 0.0
        %500 = vmatpush1.msra.mxu0 %v470
        %501 = vmatprep.subr.mxu0 0.0
        %502 = vmatpush1.msra.mxu0 %v471
        %503 = vmatprep.subr.mxu0 0.0
        %504 = vmatpush1.msra.mxu0 %v472
        %505 = vmatprep.subr.mxu0 0.0
        %506 = vmatpush1.msra.mxu0 0.0
        %507 = vmatprep.subr.mxu0 0.0
        %508 = vmatpush1.msra.mxu0 0.0
        %509 = vmatprep.subr.mxu0 0.0
        %510 = vmatpush1.msra.mxu0 0.0
        %511 = vmatprep.subr.mxu0 0.0
        %512 = vmatpush1.msra.mxu0 0.0
        %513 = vmatprep.subr.mxu0 0.0
        %514 = vmatpush1.msra.mxu0 0.0
        %515 = vmatprep.subr.mxu0 0.0
        %516 = vmatpush1.msra.mxu0 0.0
        %517 = vmatprep.subr.mxu0 0.0
        %518 = vmatpush1.msra.mxu0 0.0
        %519 = vmatprep.subr.mxu0 0.0
        %520 = vmatpush1.msra.mxu0 0.0
        %521 = vmatprep.subr.mxu0 0.0
        %522 = vmatpush1.msra.mxu0 0.0
        %523 = vmatprep.subr.mxu0 0.0
        %524 = vmatpush1.msra.mxu0 0.0
        %525 = vmatprep.subr.mxu0 0.0
        %526 = vmatpush1.msra.mxu0 0.0
        %527 = vmatprep.subr.mxu0 0.0
        %528 = vmatpush1.msra.mxu0 0.0
        %529 = vmatprep.subr.mxu0 0.0
        %530 = vmatpush1.msra.mxu0 0.0
        %531 = vmatprep.subr.mxu0 0.0
        %532 = vmatpush1.msra.mxu0 0.0
        %533 = vmatprep.subr.mxu0 0.0
        %534 = vmatpush1.msra.mxu0 0.0
        %535 = vmatprep.subr.mxu0 0.0
        %536 = vmatpush1.msra.mxu0 0.0
        %537 = vmatprep.mubr.f32.mxu0 0.0
        %538 = vmatmul.mubr.f32.gmra.mrb[0].mxu0 %v454
        %v539 = vpop.f32.mrb[0].mxu0
        %v540 = vadd.f32 0.0, %v539
        %v541 = vpop.f32.mrb[0].mxu0
        %542 = vmatprep.mubr.f32.mxu0 0.0
        %543 = vmatmul.mubr.f32.gmra.mrb[0].mxu0 %v455
        %v544 = vpop.f32.mrb[0].mxu0
        %v545 = vadd.f32 0.0, %v544
        %v546 = vpop.f32.mrb[0].mxu0
        %547 = vdwg.mxu0
        %s548 = scalar_lea.vmem %s3, 1
        %v549 = vld [vmem:[%s548] sm:$0x1]
        %v551 = vlaneseq
        %v552 = vshrl.u32 %v551, 7
        %v553 = vsub.s32 0, %v552
        %v554 = vrot.slane %v549, %v553
        %556 = vmatprep.subr.mxu0 0.0
        %557 = vmatpush1.msra.mxu0 %v540
        %558 = vmatprep.subr.mxu0 0.0
        %559 = vmatpush1.msra.mxu0 %v545
        %560 = vmatprep.subr.mxu0 0.0
        %561 = vmatpush1.msra.mxu0 0.0
        %562 = vmatprep.subr.mxu0 0.0
        %563 = vmatpush1.msra.mxu0 0.0
        %564 = vmatprep.subr.mxu0 0.0
        %565 = vmatpush1.msra.mxu0 0.0
        %566 = vmatprep.subr.mxu0 0.0
        %567 = vmatpush1.msra.mxu0 0.0
        %568 = vmatprep.subr.mxu0 0.0
        %569 = vmatpush1.msra.mxu0 0.0
        %570 = vmatprep.subr.mxu0 0.0
        %571 = vmatpush1.msra.mxu0 0.0
        %572 = vmatprep.subr.mxu0 0.0
        %573 = vmatpush1.msra.mxu0 0.0
        %574 = vmatprep.subr.mxu0 0.0
        %575 = vmatpush1.msra.mxu0 0.0
        %576 = vmatprep.subr.mxu0 0.0
        %577 = vmatpush1.msra.mxu0 0.0
        %578 = vmatprep.subr.mxu0 0.0
        %579 = vmatpush1.msra.mxu0 0.0
        %580 = vmatprep.subr.mxu0 0.0
        %581 = vmatpush1.msra.mxu0 0.0
        %582 = vmatprep.subr.mxu0 0.0
        %583 = vmatpush1.msra.mxu0 0.0
        %584 = vmatprep.subr.mxu0 0.0
        %585 = vmatpush1.msra.mxu0 0.0
        %586 = vmatprep.subr.mxu0 0.0
        %587 = vmatpush1.msra.mxu0 0.0
        %588 = vmatprep.subr.mxu0 0.0
        %589 = vmatpush1.msra.mxu0 0.0
        %590 = vmatprep.subr.mxu0 0.0
        %591 = vmatpush1.msra.mxu0 0.0
        %592 = vmatprep.subr.mxu0 0.0
        %593 = vmatpush1.msra.mxu0 0.0
        %594 = vmatprep.subr.mxu0 0.0
        %595 = vmatpush1.msra.mxu0 0.0
        %596 = vmatprep.subr.mxu0 0.0
        %597 = vmatpush1.msra.mxu0 0.0
        %598 = vmatprep.subr.mxu0 0.0
        %599 = vmatpush1.msra.mxu0 0.0
        %600 = vmatprep.subr.mxu0 0.0
        %601 = vmatpush1.msra.mxu0 0.0
        %602 = vmatprep.subr.mxu0 0.0
        %603 = vmatpush1.msra.mxu0 0.0
        %604 = vmatprep.subr.mxu0 0.0
        %605 = vmatpush1.msra.mxu0 0.0
        %606 = vmatprep.subr.mxu0 0.0
        %607 = vmatpush1.msra.mxu0 0.0
        %608 = vmatprep.subr.mxu0 0.0
        %609 = vmatpush1.msra.mxu0 0.0
        %610 = vmatprep.subr.mxu0 0.0
        %611 = vmatpush1.msra.mxu0 0.0
        %612 = vmatprep.subr.mxu0 0.0
        %613 = vmatpush1.msra.mxu0 0.0
        %614 = vmatprep.subr.mxu0 0.0
        %615 = vmatpush1.msra.mxu0 0.0
        %616 = vmatprep.subr.mxu0 0.0
        %617 = vmatpush1.msra.mxu0 0.0
        %618 = vmatprep.subr.mxu0 0.0
        %619 = vmatpush1.msra.mxu0 0.0
        %620 = vmatprep.mubr.f32.mxu0 0.0
        %621 = vmatmul.mubr.f32.gmra.mrb[0].mxu0 %v374
        %v622 = vpop.f32.mrb[0].mxu0
        %v623 = vadd.f32 %v554, %v622
        %v624 = vpop.f32.mrb[0].mxu0
        %625 = vmatprep.mubr.f32.mxu0 0.0
        %626 = vmatmul.mubr.f32.gmra.mrb[0].mxu0 %v377
        %v627 = vpop.f32.mrb[0].mxu0
        %v628 = vadd.f32 %v554, %v627
        %v629 = vpop.f32.mrb[0].mxu0
        %630 = vdwg.mxu0
        %v631 = vmax.f32 %v623, 0.0
        %v632 = vmax.f32 %v628, 0.0
        %s633 = scalar_lea.vmem [#allocation7], 256
        %v634 = vld [vmem:[%s633] sm:$0xff]
        %v635 = vld [vmem:[%s633 + $0x8] sm:$0xff]
        %v636 = vld [vmem:[%s633 + $0x10] sm:$0xff]
        %v637 = vld [vmem:[%s633 + $0x18] sm:$0xff]
        %v638 = vld [vmem:[%s633 + $0x20] sm:$0xff]
        %v639 = vld [vmem:[%s633 + $0x28] sm:$0xff]
        %v640 = vld [vmem:[%s633 + $0x30] sm:$0xff]
        %v641 = vld [vmem:[%s633 + $0x38] sm:$0xff]
        %v642 = vld [vmem:[%s633 + $0x40] sm:$0xff]
        %v643 = vld [vmem:[%s633 + $0x48] sm:$0xff]
        %v644 = vld [vmem:[%s633 + $0x50] sm:$0xff]
        %v645 = vld [vmem:[%s633 + $0x58] sm:$0xff]
        %v646 = vld [vmem:[%s633 + $0x60] sm:$0xff]
        %v647 = vld [vmem:[%s633 + $0x68] sm:$0xff]
        %v648 = vld [vmem:[%s633 + $0x70] sm:$0xff]
        %v649 = vld [vmem:[%s633 + $0x78] sm:$0xff]
        %650 = vmatprep.subr.mxu0 0.0
        %651 = vmatpush1.msra.mxu0 %v634
        %652 = vmatprep.subr.mxu0 0.0
        %653 = vmatpush1.msra.mxu0 %v635
        %654 = vmatprep.subr.mxu0 0.0
        %655 = vmatpush1.msra.mxu0 %v636
        %656 = vmatprep.subr.mxu0 0.0
        %657 = vmatpush1.msra.mxu0 %v637
        %658 = vmatprep.subr.mxu0 0.0
        %659 = vmatpush1.msra.mxu0 %v638
        %660 = vmatprep.subr.mxu0 0.0
        %661 = vmatpush1.msra.mxu0 %v639
        %662 = vmatprep.subr.mxu0 0.0
        %663 = vmatpush1.msra.mxu0 %v640
        %664 = vmatprep.subr.mxu0 0.0
        %665 = vmatpush1.msra.mxu0 %v641
        %666 = vmatprep.subr.mxu0 0.0
        %667 = vmatpush1.msra.mxu0 %v642
        %668 = vmatprep.subr.mxu0 0.0
        %669 = vmatpush1.msra.mxu0 %v643
        %670 = vmatprep.subr.mxu0 0.0
        %671 = vmatpush1.msra.mxu0 %v644
        %672 = vmatprep.subr.mxu0 0.0
        %673 = vmatpush1.msra.mxu0 %v645
        %674 = vmatprep.subr.mxu0 0.0
        %675 = vmatpush1.msra.mxu0 %v646
        %676 = vmatprep.subr.mxu0 0.0
        %677 = vmatpush1.msra.mxu0 %v647
        %678 = vmatprep.subr.mxu0 0.0
        %679 = vmatpush1.msra.mxu0 %v648
        %680 = vmatprep.subr.mxu0 0.0
        %681 = vmatpush1.msra.mxu0 %v649
        %682 = vmatprep.subr.mxu0 0.0
        %683 = vmatpush1.msra.mxu0 0.0
        %684 = vmatprep.subr.mxu0 0.0
        %685 = vmatpush1.msra.mxu0 0.0
        %686 = vmatprep.subr.mxu0 0.0
        %687 = vmatpush1.msra.mxu0 0.0
        %688 = vmatprep.subr.mxu0 0.0
        %689 = vmatpush1.msra.mxu0 0.0
        %690 = vmatprep.subr.mxu0 0.0
        %691 = vmatpush1.msra.mxu0 0.0
        %692 = vmatprep.subr.mxu0 0.0
        %693 = vmatpush1.msra.mxu0 0.0
        %694 = vmatprep.subr.mxu0 0.0
        %695 = vmatpush1.msra.mxu0 0.0
        %696 = vmatprep.subr.mxu0 0.0
        %697 = vmatpush1.msra.mxu0 0.0
        %698 = vmatprep.subr.mxu0 0.0
        %699 = vmatpush1.msra.mxu0 0.0
        %700 = vmatprep.subr.mxu0 0.0
        %701 = vmatpush1.msra.mxu0 0.0
        %702 = vmatprep.subr.mxu0 0.0
        %703 = vmatpush1.msra.mxu0 0.0
        %704 = vmatprep.subr.mxu0 0.0
        %705 = vmatpush1.msra.mxu0 0.0
        %706 = vmatprep.subr.mxu0 0.0
        %707 = vmatpush1.msra.mxu0 0.0
        %708 = vmatprep.subr.mxu0 0.0
        %709 = vmatpush1.msra.mxu0 0.0
        %710 = vmatprep.subr.mxu0 0.0
        %711 = vmatpush1.msra.mxu0 0.0
        %712 = vmatprep.subr.mxu0 0.0
        %713 = vmatpush1.msra.mxu0 0.0
        %714 = vmatprep.mubr.f32.mxu0 0.0
        %715 = vmatmul.mubr.f32.gmra.mrb[0].mxu0 %v631
        %v716 = vpop.f32.mrb[0].mxu0
        %v717 = vadd.f32 0.0, %v716
        %v718 = vpop.f32.mrb[0].mxu0
        %719 = vmatprep.mubr.f32.mxu0 0.0
        %720 = vmatmul.mubr.f32.gmra.mrb[0].mxu0 %v632
        %v721 = vpop.f32.mrb[0].mxu0
        %v722 = vadd.f32 0.0, %v721
        %v723 = vpop.f32.mrb[0].mxu0
        %724 = vdwg.mxu0
        %s725 = scalar_lea.vmem %s3, 2
        %v726 = vld [vmem:[%s725] sm:$0x1]
        %v728 = vlaneseq
        %v729 = vshrl.u32 %v728, 7
        %v730 = vsub.s32 0, %v729
        %v731 = vrot.slane %v726, %v730
        %733 = vmatprep.subr.mxu0 0.0
        %734 = vmatpush1.msra.mxu0 %v717
        %735 = vmatprep.subr.mxu0 0.0
        %736 = vmatpush1.msra.mxu0 %v722
        %737 = vmatprep.subr.mxu0 0.0
        %738 = vmatpush1.msra.mxu0 0.0
        %739 = vmatprep.subr.mxu0 0.0
        %740 = vmatpush1.msra.mxu0 0.0
        %741 = vmatprep.subr.mxu0 0.0
        %742 = vmatpush1.msra.mxu0 0.0
        %743 = vmatprep.subr.mxu0 0.0
        %744 = vmatpush1.msra.mxu0 0.0
        %745 = vmatprep.subr.mxu0 0.0
        %746 = vmatpush1.msra.mxu0 0.0
        %747 = vmatprep.subr.mxu0 0.0
        %748 = vmatpush1.msra.mxu0 0.0
        %749 = vmatprep.subr.mxu0 0.0
        %750 = vmatpush1.msra.mxu0 0.0
        %751 = vmatprep.subr.mxu0 0.0
        %752 = vmatpush1.msra.mxu0 0.0
        %753 = vmatprep.subr.mxu0 0.0
        %754 = vmatpush1.msra.mxu0 0.0
        %755 = vmatprep.subr.mxu0 0.0
        %756 = vmatpush1.msra.mxu0 0.0
        %757 = vmatprep.subr.mxu0 0.0
        %758 = vmatpush1.msra.mxu0 0.0
        %759 = vmatprep.subr.mxu0 0.0
        %760 = vmatpush1.msra.mxu0 0.0
        %761 = vmatprep.subr.mxu0 0.0
        %762 = vmatpush1.msra.mxu0 0.0
        %763 = vmatprep.subr.mxu0 0.0
        %764 = vmatpush1.msra.mxu0 0.0
        %765 = vmatprep.subr.mxu0 0.0
        %766 = vmatpush1.msra.mxu0 0.0
        %767 = vmatprep.subr.mxu0 0.0
        %768 = vmatpush1.msra.mxu0 0.0
        %769 = vmatprep.subr.mxu0 0.0
        %770 = vmatpush1.msra.mxu0 0.0
        %771 = vmatprep.subr.mxu0 0.0
        %772 = vmatpush1.msra.mxu0 0.0
        %773 = vmatprep.subr.mxu0 0.0
        %774 = vmatpush1.msra.mxu0 0.0
        %775 = vmatprep.subr.mxu0 0.0
        %776 = vmatpush1.msra.mxu0 0.0
        %777 = vmatprep.subr.mxu0 0.0
        %778 = vmatpush1.msra.mxu0 0.0
        %779 = vmatprep.subr.mxu0 0.0
        %780 = vmatpush1.msra.mxu0 0.0
        %781 = vmatprep.subr.mxu0 0.0
        %782 = vmatpush1.msra.mxu0 0.0
        %783 = vmatprep.subr.mxu0 0.0
        %784 = vmatpush1.msra.mxu0 0.0
        %785 = vmatprep.subr.mxu0 0.0
        %786 = vmatpush1.msra.mxu0 0.0
        %787 = vmatprep.subr.mxu0 0.0
        %788 = vmatpush1.msra.mxu0 0.0
        %789 = vmatprep.subr.mxu0 0.0
        %790 = vmatpush1.msra.mxu0 0.0
        %791 = vmatprep.subr.mxu0 0.0
        %792 = vmatpush1.msra.mxu0 0.0
        %793 = vmatprep.subr.mxu0 0.0
        %794 = vmatpush1.msra.mxu0 0.0
        %795 = vmatprep.subr.mxu0 0.0
        %796 = vmatpush1.msra.mxu0 0.0
        %797 = vmatprep.mubr.f32.mxu0 0.0
        %798 = vmatmul.mubr.f32.gmra.mrb[0].mxu0 %v374
        %v799 = vpop.f32.mrb[0].mxu0
        %v800 = vadd.f32 %v731, %v799
        %v801 = vpop.f32.mrb[0].mxu0
        %802 = vmatprep.mubr.f32.mxu0 0.0
        %803 = vmatmul.mubr.f32.gmra.mrb[0].mxu0 %v377
        %v804 = vpop.f32.mrb[0].mxu0
        %v805 = vadd.f32 %v731, %v804
        %v806 = vpop.f32.mrb[0].mxu0
        %807 = vdwg.mxu0
        %v808 = vmax.f32 %v800, 0.0
        %v809 = vmax.f32 %v805, 0.0
        %s810 = scalar_lea.vmem [#allocation7], 384
        %v811 = vld [vmem:[%s810] sm:$0xff]
        %v812 = vld [vmem:[%s810 + $0x8] sm:$0xff]
        %v813 = vld [vmem:[%s810 + $0x10] sm:$0xff]
        %v814 = vld [vmem:[%s810 + $0x18] sm:$0xff]
        %v815 = vld [vmem:[%s810 + $0x20] sm:$0xff]
        %v816 = vld [vmem:[%s810 + $0x28] sm:$0xff]
        %v817 = vld [vmem:[%s810 + $0x30] sm:$0xff]
        %v818 = vld [vmem:[%s810 + $0x38] sm:$0xff]
        %v819 = vld [vmem:[%s810 + $0x40] sm:$0xff]
        %v820 = vld [vmem:[%s810 + $0x48] sm:$0xff]
        %v821 = vld [vmem:[%s810 + $0x50] sm:$0xff]
        %v822 = vld [vmem:[%s810 + $0x58] sm:$0xff]
        %v823 = vld [vmem:[%s810 + $0x60] sm:$0xff]
        %v824 = vld [vmem:[%s810 + $0x68] sm:$0xff]
        %v825 = vld [vmem:[%s810 + $0x70] sm:$0xff]
        %v826 = vld [vmem:[%s810 + $0x78] sm:$0xff]
        %827 = vmatprep.subr.mxu0 0.0
        %828 = vmatpush1.msra.mxu0 %v811
        %829 = vmatprep.subr.mxu0 0.0
        %830 = vmatpush1.msra.mxu0 %v812
        %831 = vmatprep.subr.mxu0 0.0
        %832 = vmatpush1.msra.mxu0 %v813
        %833 = vmatprep.subr.mxu0 0.0
        %834 = vmatpush1.msra.mxu0 %v814
        %835 = vmatprep.subr.mxu0 0.0
        %836 = vmatpush1.msra.mxu0 %v815
        %837 = vmatprep.subr.mxu0 0.0
        %838 = vmatpush1.msra.mxu0 %v816
        %839 = vmatprep.subr.mxu0 0.0
        %840 = vmatpush1.msra.mxu0 %v817
        %841 = vmatprep.subr.mxu0 0.0
        %842 = vmatpush1.msra.mxu0 %v818
        %843 = vmatprep.subr.mxu0 0.0
        %844 = vmatpush1.msra.mxu0 %v819
        %845 = vmatprep.subr.mxu0 0.0
        %846 = vmatpush1.msra.mxu0 %v820
        %847 = vmatprep.subr.mxu0 0.0
        %848 = vmatpush1.msra.mxu0 %v821
        %849 = vmatprep.subr.mxu0 0.0
        %850 = vmatpush1.msra.mxu0 %v822
        %851 = vmatprep.subr.mxu0 0.0
        %852 = vmatpush1.msra.mxu0 %v823
        %853 = vmatprep.subr.mxu0 0.0
        %854 = vmatpush1.msra.mxu0 %v824
        %855 = vmatprep.subr.mxu0 0.0
        %856 = vmatpush1.msra.mxu0 %v825
        %857 = vmatprep.subr.mxu0 0.0
        %858 = vmatpush1.msra.mxu0 %v826
        %859 = vmatprep.subr.mxu0 0.0
        %860 = vmatpush1.msra.mxu0 0.0
        %861 = vmatprep.subr.mxu0 0.0
        %862 = vmatpush1.msra.mxu0 0.0
        %863 = vmatprep.subr.mxu0 0.0
        %864 = vmatpush1.msra.mxu0 0.0
        %865 = vmatprep.subr.mxu0 0.0
        %866 = vmatpush1.msra.mxu0 0.0
        %867 = vmatprep.subr.mxu0 0.0
        %868 = vmatpush1.msra.mxu0 0.0
        %869 = vmatprep.subr.mxu0 0.0
        %870 = vmatpush1.msra.mxu0 0.0
        %871 = vmatprep.subr.mxu0 0.0
        %872 = vmatpush1.msra.mxu0 0.0
        %873 = vmatprep.subr.mxu0 0.0
        %874 = vmatpush1.msra.mxu0 0.0
        %875 = vmatprep.subr.mxu0 0.0
        %876 = vmatpush1.msra.mxu0 0.0
        %877 = vmatprep.subr.mxu0 0.0
        %878 = vmatpush1.msra.mxu0 0.0
        %879 = vmatprep.subr.mxu0 0.0
        %880 = vmatpush1.msra.mxu0 0.0
        %881 = vmatprep.subr.mxu0 0.0
        %882 = vmatpush1.msra.mxu0 0.0
        %883 = vmatprep.subr.mxu0 0.0
        %884 = vmatpush1.msra.mxu0 0.0
        %885 = vmatprep.subr.mxu0 0.0
        %886 = vmatpush1.msra.mxu0 0.0
        %887 = vmatprep.subr.mxu0 0.0
        %888 = vmatpush1.msra.mxu0 0.0
        %889 = vmatprep.subr.mxu0 0.0
        %890 = vmatpush1.msra.mxu0 0.0
        %891 = vmatprep.mubr.f32.mxu0 0.0
        %892 = vmatmul.mubr.f32.gmra.mrb[0].mxu0 %v808
        %v893 = vpop.f32.mrb[0].mxu0
        %v894 = vadd.f32 0.0, %v893
        %v895 = vpop.f32.mrb[0].mxu0
        %896 = vmatprep.mubr.f32.mxu0 0.0
        %897 = vmatmul.mubr.f32.gmra.mrb[0].mxu0 %v809
        %v898 = vpop.f32.mrb[0].mxu0
        %v899 = vadd.f32 0.0, %v898
        %v900 = vpop.f32.mrb[0].mxu0
        %901 = vdwg.mxu0
        %s902 = scalar_lea.vmem %s3, 3
        %v903 = vld [vmem:[%s902] sm:$0x1]
        %v905 = vlaneseq
        %v906 = vshrl.u32 %v905, 7
        %v907 = vsub.s32 0, %v906
        %v908 = vrot.slane %v903, %v907
        %910 = vmatprep.subr.mxu0 0.0
        %911 = vmatpush1.msra.mxu0 %v894
        %912 = vmatprep.subr.mxu0 0.0
        %913 = vmatpush1.msra.mxu0 %v899
        %914 = vmatprep.subr.mxu0 0.0
        %915 = vmatpush1.msra.mxu0 0.0
        %916 = vmatprep.subr.mxu0 0.0
        %917 = vmatpush1.msra.mxu0 0.0
        %918 = vmatprep.subr.mxu0 0.0
        %919 = vmatpush1.msra.mxu0 0.0
        %920 = vmatprep.subr.mxu0 0.0
        %921 = vmatpush1.msra.mxu0 0.0
        %922 = vmatprep.subr.mxu0 0.0
        %923 = vmatpush1.msra.mxu0 0.0
        %924 = vmatprep.subr.mxu0 0.0
        %925 = vmatpush1.msra.mxu0 0.0
        %926 = vmatprep.subr.mxu0 0.0
        %927 = vmatpush1.msra.mxu0 0.0
        %928 = vmatprep.subr.mxu0 0.0
        %929 = vmatpush1.msra.mxu0 0.0
        %930 = vmatprep.subr.mxu0 0.0
        %931 = vmatpush1.msra.mxu0 0.0
        %932 = vmatprep.subr.mxu0 0.0
        %933 = vmatpush1.msra.mxu0 0.0
        %934 = vmatprep.subr.mxu0 0.0
        %935 = vmatpush1.msra.mxu0 0.0
        %936 = vmatprep.subr.mxu0 0.0
        %937 = vmatpush1.msra.mxu0 0.0
        %938 = vmatprep.subr.mxu0 0.0
        %939 = vmatpush1.msra.mxu0 0.0
        %940 = vmatprep.subr.mxu0 0.0
        %941 = vmatpush1.msra.mxu0 0.0
        %942 = vmatprep.subr.mxu0 0.0
        %943 = vmatpush1.msra.mxu0 0.0
        %944 = vmatprep.subr.mxu0 0.0
        %945 = vmatpush1.msra.mxu0 0.0
        %946 = vmatprep.subr.mxu0 0.0
        %947 = vmatpush1.msra.mxu0 0.0
        %948 = vmatprep.subr.mxu0 0.0
        %949 = vmatpush1.msra.mxu0 0.0
        %950 = vmatprep.subr.mxu0 0.0
        %951 = vmatpush1.msra.mxu0 0.0
        %952 = vmatprep.subr.mxu0 0.0
        %953 = vmatpush1.msra.mxu0 0.0
        %954 = vmatprep.subr.mxu0 0.0
        %955 = vmatpush1.msra.mxu0 0.0
        %956 = vmatprep.subr.mxu0 0.0
        %957 = vmatpush1.msra.mxu0 0.0
        %958 = vmatprep.subr.mxu0 0.0
        %959 = vmatpush1.msra.mxu0 0.0
        %960 = vmatprep.subr.mxu0 0.0
        %961 = vmatpush1.msra.mxu0 0.0
        %962 = vmatprep.subr.mxu0 0.0
        %963 = vmatpush1.msra.mxu0 0.0
        %964 = vmatprep.subr.mxu0 0.0
        %965 = vmatpush1.msra.mxu0 0.0
        %966 = vmatprep.subr.mxu0 0.0
        %967 = vmatpush1.msra.mxu0 0.0
        %968 = vmatprep.subr.mxu0 0.0
        %969 = vmatpush1.msra.mxu0 0.0
        %970 = vmatprep.subr.mxu0 0.0
        %971 = vmatpush1.msra.mxu0 0.0
        %972 = vmatprep.subr.mxu0 0.0
        %973 = vmatpush1.msra.mxu0 0.0
        %974 = vmatprep.mubr.f32.mxu0 0.0
        %975 = vmatmul.mubr.f32.gmra.mrb[0].mxu0 %v374
        %v976 = vpop.f32.mrb[0].mxu0
        %v977 = vadd.f32 %v908, %v976
        %v978 = vpop.f32.mrb[0].mxu0
        %979 = vmatprep.mubr.f32.mxu0 0.0
        %980 = vmatmul.mubr.f32.gmra.mrb[0].mxu0 %v377
        %v981 = vpop.f32.mrb[0].mxu0
        %v982 = vadd.f32 %v908, %v981
        %v983 = vpop.f32.mrb[0].mxu0
        %984 = vdwg.mxu0
        %v985 = vmax.f32 %v977, 0.0
        %v986 = vmax.f32 %v982, 0.0
        %s987 = scalar_lea.vmem [#allocation7], 512
        %v988 = vld [vmem:[%s987] sm:$0xff]
        %v989 = vld [vmem:[%s987 + $0x8] sm:$0xff]
        %v990 = vld [vmem:[%s987 + $0x10] sm:$0xff]
        %v991 = vld [vmem:[%s987 + $0x18] sm:$0xff]
        %v992 = vld [vmem:[%s987 + $0x20] sm:$0xff]
        %v993 = vld [vmem:[%s987 + $0x28] sm:$0xff]
        %v994 = vld [vmem:[%s987 + $0x30] sm:$0xff]
        %v995 = vld [vmem:[%s987 + $0x38] sm:$0xff]
        %v996 = vld [vmem:[%s987 + $0x40] sm:$0xff]
        %v997 = vld [vmem:[%s987 + $0x48] sm:$0xff]
        %v998 = vld [vmem:[%s987 + $0x50] sm:$0xff]
        %v999 = vld [vmem:[%s987 + $0x58] sm:$0xff]
        %v1000 = vld [vmem:[%s987 + $0x60] sm:$0xff]
        %v1001 = vld [vmem:[%s987 + $0x68] sm:$0xff]
        %v1002 = vld [vmem:[%s987 + $0x70] sm:$0xff]
        %v1003 = vld [vmem:[%s987 + $0x78] sm:$0xff]
        %1004 = vmatprep.subr.mxu0 0.0
        %1005 = vmatpush1.msra.mxu0 %v988
        %1006 = vmatprep.subr.mxu0 0.0
        %1007 = vmatpush1.msra.mxu0 %v989
        %1008 = vmatprep.subr.mxu0 0.0
        %1009 = vmatpush1.msra.mxu0 %v990
        %1010 = vmatprep.subr.mxu0 0.0
        %1011 = vmatpush1.msra.mxu0 %v991
        %1012 = vmatprep.subr.mxu0 0.0
        %1013 = vmatpush1.msra.mxu0 %v992
        %1014 = vmatprep.subr.mxu0 0.0
        %1015 = vmatpush1.msra.mxu0 %v993
        %1016 = vmatprep.subr.mxu0 0.0
        %1017 = vmatpush1.msra.mxu0 %v994
        %1018 = vmatprep.subr.mxu0 0.0
        %1019 = vmatpush1.msra.mxu0 %v995
        %1020 = vmatprep.subr.mxu0 0.0
        %1021 = vmatpush1.msra.mxu0 %v996
        %1022 = vmatprep.subr.mxu0 0.0
        %1023 = vmatpush1.msra.mxu0 %v997
        %1024 = vmatprep.subr.mxu0 0.0
        %1025 = vmatpush1.msra.mxu0 %v998
        %1026 = vmatprep.subr.mxu0 0.0
        %1027 = vmatpush1.msra.mxu0 %v999
        %1028 = vmatprep.subr.mxu0 0.0
        %1029 = vmatpush1.msra.mxu0 %v1000
        %1030 = vmatprep.subr.mxu0 0.0
        %1031 = vmatpush1.msra.mxu0 %v1001
        %1032 = vmatprep.subr.mxu0 0.0
        %1033 = vmatpush1.msra.mxu0 %v1002
        %1034 = vmatprep.subr.mxu0 0.0
        %1035 = vmatpush1.msra.mxu0 %v1003
        %1036 = vmatprep.subr.mxu0 0.0
        %1037 = vmatpush1.msra.mxu0 0.0
        %1038 = vmatprep.subr.mxu0 0.0
        %1039 = vmatpush1.msra.mxu0 0.0
        %1040 = vmatprep.subr.mxu0 0.0
        %1041 = vmatpush1.msra.mxu0 0.0
        %1042 = vmatprep.subr.mxu0 0.0
        %1043 = vmatpush1.msra.mxu0 0.0
        %1044 = vmatprep.subr.mxu0 0.0
        %1045 = vmatpush1.msra.mxu0 0.0
        %1046 = vmatprep.subr.mxu0 0.0
        %1047 = vmatpush1.msra.mxu0 0.0
        %1048 = vmatprep.subr.mxu0 0.0
        %1049 = vmatpush1.msra.mxu0 0.0
        %1050 = vmatprep.subr.mxu0 0.0
        %1051 = vmatpush1.msra.mxu0 0.0
        %1052 = vmatprep.subr.mxu0 0.0
        %1053 = vmatpush1.msra.mxu0 0.0
        %1054 = vmatprep.subr.mxu0 0.0
        %1055 = vmatpush1.msra.mxu0 0.0
        %1056 = vmatprep.subr.mxu0 0.0
        %1057 = vmatpush1.msra.mxu0 0.0
        %1058 = vmatprep.subr.mxu0 0.0
        %1059 = vmatpush1.msra.mxu0 0.0
        %1060 = vmatprep.subr.mxu0 0.0
        %1061 = vmatpush1.msra.mxu0 0.0
        %1062 = vmatprep.subr.mxu0 0.0
        %1063 = vmatpush1.msra.mxu0 0.0
        %1064 = vmatprep.subr.mxu0 0.0
        %1065 = vmatpush1.msra.mxu0 0.0
        %1066 = vmatprep.subr.mxu0 0.0
        %1067 = vmatpush1.msra.mxu0 0.0
        %1068 = vmatprep.mubr.f32.mxu0 0.0
        %1069 = vmatmul.mubr.f32.gmra.mrb[0].mxu0 %v985
        %v1070 = vpop.f32.mrb[0].mxu0
        %v1071 = vadd.f32 0.0, %v1070
        %v1072 = vpop.f32.mrb[0].mxu0
        %1073 = vmatprep.mubr.f32.mxu0 0.0
        %1074 = vmatmul.mubr.f32.gmra.mrb[0].mxu0 %v986
        %v1075 = vpop.f32.mrb[0].mxu0
        %v1076 = vadd.f32 0.0, %v1075
        %v1077 = vpop.f32.mrb[0].mxu0
        %1078 = vdwg.mxu0
        %s1079 = scalar_lea.vmem %s3, 4
        %v1080 = vld [vmem:[%s1079] sm:$0x1]
        %v1082 = vlaneseq
        %v1083 = vshrl.u32 %v1082, 7
        %v1084 = vsub.s32 0, %v1083
        %v1085 = vrot.slane %v1080, %v1084
        %1087 = vmatprep.subr.mxu0 0.0
        %1088 = vmatpush1.msra.mxu0 %v1071
        %1089 = vmatprep.subr.mxu0 0.0
        %1090 = vmatpush1.msra.mxu0 %v1076
        %1091 = vmatprep.subr.mxu0 0.0
        %1092 = vmatpush1.msra.mxu0 0.0
        %1093 = vmatprep.subr.mxu0 0.0
        %1094 = vmatpush1.msra.mxu0 0.0
        %1095 = vmatprep.subr.mxu0 0.0
        %1096 = vmatpush1.msra.mxu0 0.0
        %1097 = vmatprep.subr.mxu0 0.0
        %1098 = vmatpush1.msra.mxu0 0.0
        %1099 = vmatprep.subr.mxu0 0.0
        %1100 = vmatpush1.msra.mxu0 0.0
        %1101 = vmatprep.subr.mxu0 0.0
        %1102 = vmatpush1.msra.mxu0 0.0
        %1103 = vmatprep.subr.mxu0 0.0
        %1104 = vmatpush1.msra.mxu0 0.0
        %1105 = vmatprep.subr.mxu0 0.0
        %1106 = vmatpush1.msra.mxu0 0.0
        %1107 = vmatprep.subr.mxu0 0.0
        %1108 = vmatpush1.msra.mxu0 0.0
        %1109 = vmatprep.subr.mxu0 0.0
        %1110 = vmatpush1.msra.mxu0 0.0
        %1111 = vmatprep.subr.mxu0 0.0
        %1112 = vmatpush1.msra.mxu0 0.0
        %1113 = vmatprep.subr.mxu0 0.0
        %1114 = vmatpush1.msra.mxu0 0.0
        %1115 = vmatprep.subr.mxu0 0.0
        %1116 = vmatpush1.msra.mxu0 0.0
        %1117 = vmatprep.subr.mxu0 0.0
        %1118 = vmatpush1.msra.mxu0 0.0
        %1119 = vmatprep.subr.mxu0 0.0
        %1120 = vmatpush1.msra.mxu0 0.0
        %1121 = vmatprep.subr.mxu0 0.0
        %1122 = vmatpush1.msra.mxu0 0.0
        %1123 = vmatprep.subr.mxu0 0.0
        %1124 = vmatpush1.msra.mxu0 0.0
        %1125 = vmatprep.subr.mxu0 0.0
        %1126 = vmatpush1.msra.mxu0 0.0
        %1127 = vmatprep.subr.mxu0 0.0
        %1128 = vmatpush1.msra.mxu0 0.0
        %1129 = vmatprep.subr.mxu0 0.0
        %1130 = vmatpush1.msra.mxu0 0.0
        %1131 = vmatprep.subr.mxu0 0.0
        %1132 = vmatpush1.msra.mxu0 0.0
        %1133 = vmatprep.subr.mxu0 0.0
        %1134 = vmatpush1.msra.mxu0 0.0
        %1135 = vmatprep.subr.mxu0 0.0
        %1136 = vmatpush1.msra.mxu0 0.0
        %1137 = vmatprep.subr.mxu0 0.0
        %1138 = vmatpush1.msra.mxu0 0.0
        %1139 = vmatprep.subr.mxu0 0.0
        %1140 = vmatpush1.msra.mxu0 0.0
        %1141 = vmatprep.subr.mxu0 0.0
        %1142 = vmatpush1.msra.mxu0 0.0
        %1143 = vmatprep.subr.mxu0 0.0
        %1144 = vmatpush1.msra.mxu0 0.0
        %1145 = vmatprep.subr.mxu0 0.0
        %1146 = vmatpush1.msra.mxu0 0.0
        %1147 = vmatprep.subr.mxu0 0.0
        %1148 = vmatpush1.msra.mxu0 0.0
        %1149 = vmatprep.subr.mxu0 0.0
        %1150 = vmatpush1.msra.mxu0 0.0
        %1151 = vmatprep.mubr.f32.mxu0 0.0
        %1152 = vmatmul.mubr.f32.gmra.mrb[0].mxu0 %v374
        %v1153 = vpop.f32.mrb[0].mxu0
        %v1154 = vadd.f32 %v1085, %v1153
        %v1155 = vpop.f32.mrb[0].mxu0
        %1156 = vmatprep.mubr.f32.mxu0 0.0
        %1157 = vmatmul.mubr.f32.gmra.mrb[0].mxu0 %v377
        %v1158 = vpop.f32.mrb[0].mxu0
        %v1159 = vadd.f32 %v1085, %v1158
        %v1160 = vpop.f32.mrb[0].mxu0
        %1161 = vdwg.mxu0
        %v1162 = vmax.f32 %v1154, 0.0
        %v1163 = vmax.f32 %v1159, 0.0
        %s1164 = scalar_lea.vmem [#allocation7], 640
        %v1165 = vld [vmem:[%s1164] sm:$0xff]
        %v1166 = vld [vmem:[%s1164 + $0x8] sm:$0xff]
        %v1167 = vld [vmem:[%s1164 + $0x10] sm:$0xff]
        %v1168 = vld [vmem:[%s1164 + $0x18] sm:$0xff]
        %v1169 = vld [vmem:[%s1164 + $0x20] sm:$0xff]
        %v1170 = vld [vmem:[%s1164 + $0x28] sm:$0xff]
        %v1171 = vld [vmem:[%s1164 + $0x30] sm:$0xff]
        %v1172 = vld [vmem:[%s1164 + $0x38] sm:$0xff]
        %v1173 = vld [vmem:[%s1164 + $0x40] sm:$0xff]
        %v1174 = vld [vmem:[%s1164 + $0x48] sm:$0xff]
        %v1175 = vld [vmem:[%s1164 + $0x50] sm:$0xff]
        %v1176 = vld [vmem:[%s1164 + $0x58] sm:$0xff]
        %v1177 = vld [vmem:[%s1164 + $0x60] sm:$0xff]
        %v1178 = vld [vmem:[%s1164 + $0x68] sm:$0xff]
        %v1179 = vld [vmem:[%s1164 + $0x70] sm:$0xff]
        %v1180 = vld [vmem:[%s1164 + $0x78] sm:$0xff]
        %1181 = vmatprep.subr.mxu0 0.0
        %1182 = vmatpush1.msra.mxu0 %v1165
        %1183 = vmatprep.subr.mxu0 0.0
        %1184 = vmatpush1.msra.mxu0 %v1166
        %1185 = vmatprep.subr.mxu0 0.0
        %1186 = vmatpush1.msra.mxu0 %v1167
        %1187 = vmatprep.subr.mxu0 0.0
        %1188 = vmatpush1.msra.mxu0 %v1168
        %1189 = vmatprep.subr.mxu0 0.0
        %1190 = vmatpush1.msra.mxu0 %v1169
        %1191 = vmatprep.subr.mxu0 0.0
        %1192 = vmatpush1.msra.mxu0 %v1170
        %1193 = vmatprep.subr.mxu0 0.0
        %1194 = vmatpush1.msra.mxu0 %v1171
        %1195 = vmatprep.subr.mxu0 0.0
        %1196 = vmatpush1.msra.mxu0 %v1172
        %1197 = vmatprep.subr.mxu0 0.0
        %1198 = vmatpush1.msra.mxu0 %v1173
        %1199 = vmatprep.subr.mxu0 0.0
        %1200 = vmatpush1.msra.mxu0 %v1174
        %1201 = vmatprep.subr.mxu0 0.0
        %1202 = vmatpush1.msra.mxu0 %v1175
        %1203 = vmatprep.subr.mxu0 0.0
        %1204 = vmatpush1.msra.mxu0 %v1176
        %1205 = vmatprep.subr.mxu0 0.0
        %1206 = vmatpush1.msra.mxu0 %v1177
        %1207 = vmatprep.subr.mxu0 0.0
        %1208 = vmatpush1.msra.mxu0 %v1178
        %1209 = vmatprep.subr.mxu0 0.0
        %1210 = vmatpush1.msra.mxu0 %v1179
        %1211 = vmatprep.subr.mxu0 0.0
        %1212 = vmatpush1.msra.mxu0 %v1180
        %1213 = vmatprep.subr.mxu0 0.0
        %1214 = vmatpush1.msra.mxu0 0.0
        %1215 = vmatprep.subr.mxu0 0.0
        %1216 = vmatpush1.msra.mxu0 0.0
        %1217 = vmatprep.subr.mxu0 0.0
        %1218 = vmatpush1.msra.mxu0 0.0
        %1219 = vmatprep.subr.mxu0 0.0
        %1220 = vmatpush1.msra.mxu0 0.0
        %1221 = vmatprep.subr.mxu0 0.0
        %1222 = vmatpush1.msra.mxu0 0.0
        %1223 = vmatprep.subr.mxu0 0.0
        %1224 = vmatpush1.msra.mxu0 0.0
        %1225 = vmatprep.subr.mxu0 0.0
        %1226 = vmatpush1.msra.mxu0 0.0
        %1227 = vmatprep.subr.mxu0 0.0
        %1228 = vmatpush1.msra.mxu0 0.0
        %1229 = vmatprep.subr.mxu0 0.0
        %1230 = vmatpush1.msra.mxu0 0.0
        %1231 = vmatprep.subr.mxu0 0.0
        %1232 = vmatpush1.msra.mxu0 0.0
        %1233 = vmatprep.subr.mxu0 0.0
        %1234 = vmatpush1.msra.mxu0 0.0
        %1235 = vmatprep.subr.mxu0 0.0
        %1236 = vmatpush1.msra.mxu0 0.0
        %1237 = vmatprep.subr.mxu0 0.0
        %1238 = vmatpush1.msra.mxu0 0.0
        %1239 = vmatprep.subr.mxu0 0.0
        %1240 = vmatpush1.msra.mxu0 0.0
        %1241 = vmatprep.subr.mxu0 0.0
        %1242 = vmatpush1.msra.mxu0 0.0
        %1243 = vmatprep.subr.mxu0 0.0
        %1244 = vmatpush1.msra.mxu0 0.0
        %1245 = vmatprep.mubr.f32.mxu0 0.0
        %1246 = vmatmul.mubr.f32.gmra.mrb[0].mxu0 %v1162
        %v1247 = vpop.f32.mrb[0].mxu0
        %v1248 = vadd.f32 0.0, %v1247
        %v1249 = vpop.f32.mrb[0].mxu0
        %1250 = vmatprep.mubr.f32.mxu0 0.0
        %1251 = vmatmul.mubr.f32.gmra.mrb[0].mxu0 %v1163
        %v1252 = vpop.f32.mrb[0].mxu0
        %v1253 = vadd.f32 0.0, %v1252
        %v1254 = vpop.f32.mrb[0].mxu0
        %1255 = vdwg.mxu0
        %s1256 = scalar_lea.vmem %s3, 5
        %v1257 = vld [vmem:[%s1256] sm:$0x1]
        %v1259 = vlaneseq
        %v1260 = vshrl.u32 %v1259, 7
        %v1261 = vsub.s32 0, %v1260
        %v1262 = vrot.slane %v1257, %v1261
        %1264 = vmatprep.subr.mxu0 0.0
        %1265 = vmatpush1.msra.mxu0 %v1248
        %1266 = vmatprep.subr.mxu0 0.0
        %1267 = vmatpush1.msra.mxu0 %v1253
        %1268 = vmatprep.subr.mxu0 0.0
        %1269 = vmatpush1.msra.mxu0 0.0
        %1270 = vmatprep.subr.mxu0 0.0
        %1271 = vmatpush1.msra.mxu0 0.0
        %1272 = vmatprep.subr.mxu0 0.0
        %1273 = vmatpush1.msra.mxu0 0.0
        %1274 = vmatprep.subr.mxu0 0.0
        %1275 = vmatpush1.msra.mxu0 0.0
        %1276 = vmatprep.subr.mxu0 0.0
        %1277 = vmatpush1.msra.mxu0 0.0
        %1278 = vmatprep.subr.mxu0 0.0
        %1279 = vmatpush1.msra.mxu0 0.0
        %1280 = vmatprep.subr.mxu0 0.0
        %1281 = vmatpush1.msra.mxu0 0.0
        %1282 = vmatprep.subr.mxu0 0.0
        %1283 = vmatpush1.msra.mxu0 0.0
        %1284 = vmatprep.subr.mxu0 0.0
        %1285 = vmatpush1.msra.mxu0 0.0
        %1286 = vmatprep.subr.mxu0 0.0
        %1287 = vmatpush1.msra.mxu0 0.0
        %1288 = vmatprep.subr.mxu0 0.0
        %1289 = vmatpush1.msra.mxu0 0.0
        %1290 = vmatprep.subr.mxu0 0.0
        %1291 = vmatpush1.msra.mxu0 0.0
        %1292 = vmatprep.subr.mxu0 0.0
        %1293 = vmatpush1.msra.mxu0 0.0
        %1294 = vmatprep.subr.mxu0 0.0
        %1295 = vmatpush1.msra.mxu0 0.0
        %1296 = vmatprep.subr.mxu0 0.0
        %1297 = vmatpush1.msra.mxu0 0.0
        %1298 = vmatprep.subr.mxu0 0.0
        %1299 = vmatpush1.msra.mxu0 0.0
        %1300 = vmatprep.subr.mxu0 0.0
        %1301 = vmatpush1.msra.mxu0 0.0
        %1302 = vmatprep.subr.mxu0 0.0
        %1303 = vmatpush1.msra.mxu0 0.0
        %1304 = vmatprep.subr.mxu0 0.0
        %1305 = vmatpush1.msra.mxu0 0.0
        %1306 = vmatprep.subr.mxu0 0.0
        %1307 = vmatpush1.msra.mxu0 0.0
        %1308 = vmatprep.subr.mxu0 0.0
        %1309 = vmatpush1.msra.mxu0 0.0
        %1310 = vmatprep.subr.mxu0 0.0
        %1311 = vmatpush1.msra.mxu0 0.0
        %1312 = vmatprep.subr.mxu0 0.0
        %1313 = vmatpush1.msra.mxu0 0.0
        %1314 = vmatprep.subr.mxu0 0.0
        %1315 = vmatpush1.msra.mxu0 0.0
        %1316 = vmatprep.subr.mxu0 0.0
        %1317 = vmatpush1.msra.mxu0 0.0
        %1318 = vmatprep.subr.mxu0 0.0
        %1319 = vmatpush1.msra.mxu0 0.0
        %1320 = vmatprep.subr.mxu0 0.0
        %1321 = vmatpush1.msra.mxu0 0.0
        %1322 = vmatprep.subr.mxu0 0.0
        %1323 = vmatpush1.msra.mxu0 0.0
        %1324 = vmatprep.subr.mxu0 0.0
        %1325 = vmatpush1.msra.mxu0 0.0
        %1326 = vmatprep.subr.mxu0 0.0
        %1327 = vmatpush1.msra.mxu0 0.0
        %1328 = vmatprep.mubr.f32.mxu0 0.0
        %1329 = vmatmul.mubr.f32.gmra.mrb[0].mxu0 %v374
        %v1330 = vpop.f32.mrb[0].mxu0
        %v1331 = vadd.f32 %v1262, %v1330
        %v1332 = vpop.f32.mrb[0].mxu0
        %1333 = vmatprep.mubr.f32.mxu0 0.0
        %1334 = vmatmul.mubr.f32.gmra.mrb[0].mxu0 %v377
        %v1335 = vpop.f32.mrb[0].mxu0
        %v1336 = vadd.f32 %v1262, %v1335
        %v1337 = vpop.f32.mrb[0].mxu0
        %1338 = vdwg.mxu0
        %1339 = vst [vmem:[%s269] sm:$0xff] %v1331
        %1340 = vst [vmem:[%s269 + $0x8] sm:$0xff] %v1336
        %s1341 = sand.u32 %s126, 1
        %s1342 = scalar_lea.sflag [#allocation4], %s1341
        %s1343 = sand.u32 %s126, 1
        %s1344 = smul.addr %s1343, 16
        %s1345 = scalar_lea.vmem [#allocation8], %s1344
        // Predicated region
        $region49: #{tpu_custom_call.1} parent=35 // pred_check
          %p1346 = pneg %p136
        $region50: #{tpu_custom_call.1} parent=35 // pred_check_branch
          %1348 = sbr.rel (%p1346) target = $region52
        $region51: #{tpu_custom_call.1} parent=35 // pred_region
          %s1350 = ssub.s32 256, 256
          %1351 = vsyncadd %s1342, %s1350
          %s1352 = smul.addr %s24, 2
          %s1353 = smul.addr %s1352, 128
          %s1354 = scalar_lea.hbm %s4, %s1353
          %s1355 = sshll.u32 %s1345, 4
          %s1356 = int_to_ptr.vmem [resolvable:$true] %s1355
          %1361 = dma.vmem_to_hbm [thread:$0]  %s1356, 256, %s1354, %s1342, 128, 128, 8
        $region52: #{tpu_custom_call.1} parent=35 // pred_fallthru
          _
      $region36: #{tpu_custom_call.1} parent=5 // pred_fallthru
        _
      %p1362 = scmp.le.s32.totalorder 2, %s19
      // Predicated region
      $region53: #{tpu_custom_call.1} parent=5 // pred_check
        %p1363 = pneg %p1362
      $region54: #{tpu_custom_call.1} parent=5 // pred_check_branch
        %1365 = sbr.rel (%p1363) target = $region56
      $region55: #{tpu_custom_call.1} parent=5 // pred_region
        %s1366 = ssub.s32 %s19, 2
        // Predicated region
        $region57: #{tpu_custom_call.1} parent=55 // pred_check
          %p1367 = pneg %p142
        $region58: #{tpu_custom_call.1} parent=55 // pred_check_branch
          %1369 = sbr.rel (%p1367) target = $region60
        $region59: #{tpu_custom_call.1} parent=55 // pred_region
          %s1370 = sand.u32 %s127, 1
          %s1371 = scalar_lea.sflag [#allocation4], %s1370
          %s1372 = sand.u32 %s127, 1
          %s1373 = smul.addr %s1372, 16
          %s1374 = scalar_lea.vmem [#allocation8], %s1373
          %1375 = dma.done %s1371, 256
        $region60: #{tpu_custom_call.1} parent=55 // pred_fallthru
          _
      $region56: #{tpu_custom_call.1} parent=5 // pred_fallthru
        _
    $region6: #{tpu_custom_call.1} parent=1 // loop_footer
      %s23 = sadd.s32 1, %s19
    $region7: #{tpu_custom_call.1} parent=1 // loop_footer_branch
      %18 = sbr.rel target = $region3
    $region8: #{tpu_custom_call.1} parent=1 // loop_exit
      _
    %1376 = vsyncpa [#allocation3], 1
    %s1377 = scalar_lea.sflag [#allocation3], 1
    %1378 = vsyncpa %s1377, 1
    %1379 = vsyncpa [#allocation6], 1
    %s1380 = scalar_lea.sflag [#allocation6], 1
    %1381 = vsyncpa %s1380, 1
    %1382 = vsyncpa [#allocation4], 1
    %s1383 = scalar_lea.sflag [#allocation4], 1
    %1384 = vsyncpa %s1383, 1

</llo_original>
